<compile_context>
chip_gen: v7x
topology: tpu7x:2x2x1
jax: 0.10.0
libtpu: 0.0.40
codegen_flags: <defaults>
</compile_context>

<pallas_src>
import jax
import jax.numpy as jnp
from jax.experimental import pallas as pl
from jax.experimental.pallas import tpu as pltpu


def _round_up(x, m):
    return ((x + m - 1) // m) * m


def _critic_kernel(obs_ref, acs_ref, w0o_ref, w0a_ref, b0_ref,
                   w1_ref, b1_ref, w2t_ref, b2_ref, out_ref):
    """One batch tile of the MLP forward: 4 matmuls + 2 tanh, lane-dense store."""
    # Layer 0 -- split first weight so the [obs, acs] concat never touches HBM.
    h = jnp.tanh(
        jnp.dot(obs_ref[...], w0o_ref[...], preferred_element_type=jnp.float32)
        + jnp.dot(acs_ref[...], w0a_ref[...], preferred_element_type=jnp.float32)
        + b0_ref[...]
    )
    # Layer 1.
    h = jnp.tanh(
        jnp.dot(h, w1_ref[...], preferred_element_type=jnp.float32) + b1_ref[...]
    )
    # Output layer in feature-major form: [1, size] @ [size, tile] -> [1, tile].
    # Batch lands on the 128-lane axis -> unmasked vst instead of a (tile, 1) masked store.
    out_ref[...] = (
        jnp.dot(w2t_ref[...], h.T, preferred_element_type=jnp.float32) + b2_ref[...]
    )


def state_action_critic_forward(obs, acs, params, *, batch_tile=512):
    """Pallas implementation of StateActionCritic.forward(obs, acs) -> [B]."""
    obs = obs.astype(jnp.float32)
    acs = acs.astype(jnp.float32)
    B, ob_dim = obs.shape
    _, ac_dim = acs.shape
    (w0, b0), (w1, b1), (w2, b2) = params
    size = w0.shape[1]
    d_in = ob_dim + ac_dim

    # Tile is a multiple of 128 (lane-dense output), and no larger than needed.
    batch_tile = _round_up(batch_tile, 128)
    tile = min(batch_tile, _round_up(B, 128))
    Bp = _round_up(B, tile)
    if Bp != B:
        obs = jnp.pad(obs, ((0, Bp - B), (0, 0)))
        acs = jnp.pad(acs, ((0, Bp - B), (0, 0)))
    grid = (Bp // tile,)

    # Split W0 (removes the HBM concat) and transpose the output-layer weight.
    w0_obs = w0[:ob_dim, :]   # [ob_dim, size]
    w0_acs = w0[ob_dim:, :]   # [ac_dim, size]
    w2_t = w2.T               # [1, size]
    # b0, b1 are [1, size]; b2 is [1, 1].

    full = lambda a: pl.BlockSpec(a.shape, lambda i: (0, 0))  # weights stay VMEM-resident

    cost = pl.CostEstimate(
        flops=2 * Bp * (d_in * size + size * size + size),
        transcendentals=2 * Bp * size,
        bytes_accessed=4 * (Bp * (d_in + 1)
                            + (d_in * size + size * size + size) + (2 * size + 1)),
    )

    out2d = pl.pallas_call(
        _critic_kernel,
        out_shape=jax.ShapeDtypeStruct((1, Bp), jnp.float32),
        grid=grid,
        in_specs=[
            pl.BlockSpec((tile, ob_dim), lambda i: (i, 0)),  # obs, tiled over batch
            pl.BlockSpec((tile, ac_dim), lambda i: (i, 0)),  # acs, tiled over batch
            full(w0_obs), full(w0_acs), full(b0),
            full(w1), full(b1),
            full(w2_t), full(b2),
        ],
        out_specs=pl.BlockSpec((1, tile), lambda i: (0, i)),  # batch on lanes
        compiler_params=pltpu.CompilerParams(dimension_semantics=("parallel",)),
        cost_estimate=cost,
    )(obs, acs, w0_obs, w0_acs, b0, w1, b1, w2_t, b2)

    return out2d[0, :B]  # [B], matches torch .squeeze(-1)


def init_params(key, ob_dim, ac_dim, n_layers, size):
    """Deterministic synthetic init (shapes match nn.Linear layers of build_mlp)."""
    assert n_layers == 2, "this script hard-codes n_layers=2 hidden layers in the kernel"
    dims = [ob_dim + ac_dim, size, size, 1]
    params = []
    for i in range(len(dims) - 1):
        key, kw, kb = jax.random.split(key, 3)
        bound = 1.0 / jnp.sqrt(dims[i])
        # stored as [in, out] (transposed w.r.t. torch Linear.weight)
        w = jax.random.uniform(kw, (dims[i], dims[i + 1]), jnp.float32, -bound, bound)
        b = jax.random.uniform(kb, (1, dims[i + 1]), jnp.float32, -bound, bound)
        params.append((w, b))
    return params


def _reference_forward(obs, acs, params):
    x = jnp.concatenate([obs, acs], axis=-1).astype(jnp.float32)
    (w0, b0), (w1, b1), (w2, b2) = params
    h = jnp.tanh(x @ w0 + b0)
    h = jnp.tanh(h @ w1 + b1)
    return (h @ w2 + b2).squeeze(-1)


if __name__ == "__main__":
    ob_dim, ac_dim, n_layers, size = 6, 3, 2, 32
    B = 1000  # not a tile multiple -> exercises padding; grid=(2,) keeps both v7x TCs busy

    key = jax.random.PRNGKey(0)
    key, k_obs, k_acs, k_par = jax.random.split(key, 4)
    obs = jax.random.normal(k_obs, (B, ob_dim), jnp.float32)
    acs = jax.random.normal(k_acs, (B, ac_dim), jnp.float32)
    params = init_params(k_par, ob_dim, ac_dim, n_layers, size)

    q = state_action_critic_forward(obs, acs, params, batch_tile=512)
    q = jax.block_until_ready(q)

    q_ref = _reference_forward(obs, acs, params)
    assert q.shape == (B,)
    assert jnp.allclose(q, q_ref, atol=1e-5, rtol=1e-5), "mismatch vs JAX reference"

    print("KERNEL_OK")
</pallas_src>

<mosaic_0001>
module attributes {stable_mosaic.version = 11 : i64} {
  func.func @_critic_kernel(%arg0: i32, %arg1: memref<512x6xf32, #tpu.memory_space<vmem>>, %arg2: memref<512x3xf32, #tpu.memory_space<vmem>>, %arg3: memref<6x32xf32, #tpu.memory_space<vmem>>, %arg4: memref<3x32xf32, #tpu.memory_space<vmem>>, %arg5: memref<1x32xf32, #tpu.memory_space<vmem>>, %arg6: memref<32x32xf32, #tpu.memory_space<vmem>>, %arg7: memref<1x32xf32, #tpu.memory_space<vmem>>, %arg8: memref<1x32xf32, #tpu.memory_space<vmem>>, %arg9: memref<1x1xf32, #tpu.memory_space<vmem>>, %arg10: memref<1x512xf32, #tpu.memory_space<vmem>>) attributes {dimension_semantics = [#tpu.dimension_semantics<parallel>], iteration_bounds = array<i64: 2>, scalar_prefetch = 0 : i64, scratch_operands = 0 : i64, tpu.core_type = #tpu.core_type<tc>, window_params = [{transform_indices = @transform_0, window_bounds = array<i64: 512, 6>}, {transform_indices = @transform_1, window_bounds = array<i64: 512, 3>}, {pipeline_mode = #tpu.pipeline_mode<synchronous>, transform_indices = @transform_2, window_bounds = array<i64: 6, 32>}, {pipeline_mode = #tpu.pipeline_mode<synchronous>, transform_indices = @transform_3, window_bounds = array<i64: 3, 32>}, {pipeline_mode = #tpu.pipeline_mode<synchronous>, transform_indices = @transform_4, window_bounds = array<i64: 1, 32>}, {pipeline_mode = #tpu.pipeline_mode<synchronous>, transform_indices = @transform_5, window_bounds = array<i64: 32, 32>}, {pipeline_mode = #tpu.pipeline_mode<synchronous>, transform_indices = @transform_6, window_bounds = array<i64: 1, 32>}, {pipeline_mode = #tpu.pipeline_mode<synchronous>, transform_indices = @transform_7, window_bounds = array<i64: 1, 32>}, {pipeline_mode = #tpu.pipeline_mode<synchronous>, transform_indices = @transform_8, window_bounds = array<i64: 1, 1>}, {transform_indices = @transform_9, window_bounds = array<i64: 1, 512>}]} {
    %c0 = arith.constant 0 : index
    %c0_0 = arith.constant 0 : index
    %0 = vector.load %arg1[%c0, %c0_0] : memref<512x6xf32, #tpu.memory_space<vmem>>, vector<512x6xf32>
    %c0_1 = arith.constant 0 : index
    %c0_2 = arith.constant 0 : index
    %1 = vector.load %arg3[%c0_1, %c0_2] : memref<6x32xf32, #tpu.memory_space<vmem>>, vector<6x32xf32>
    %cst = arith.constant dense<0.000000e+00> : vector<512x32xf32>
    %2 = tpu.matmul %0, %1, %cst {dimension_numbers = #tpu.dot_dimension_numbers<[1], [0], [0], [1], [0, 0, 1, 1], [], []>} : vector<512x6xf32>, vector<6x32xf32>, vector<512x32xf32> -> vector<512x32xf32>
    %c0_3 = arith.constant 0 : index
    %c0_4 = arith.constant 0 : index
    %3 = vector.load %arg2[%c0_3, %c0_4] : memref<512x3xf32, #tpu.memory_space<vmem>>, vector<512x3xf32>
    %c0_5 = arith.constant 0 : index
    %c0_6 = arith.constant 0 : index
    %4 = vector.load %arg4[%c0_5, %c0_6] : memref<3x32xf32, #tpu.memory_space<vmem>>, vector<3x32xf32>
    %cst_7 = arith.constant dense<0.000000e+00> : vector<512x32xf32>
    %5 = tpu.matmul %3, %4, %cst_7 {dimension_numbers = #tpu.dot_dimension_numbers<[1], [0], [0], [1], [0, 0, 1, 1], [], []>} : vector<512x3xf32>, vector<3x32xf32>, vector<512x32xf32> -> vector<512x32xf32>
    %6 = arith.addf %2, %5 : vector<512x32xf32>
    %c0_8 = arith.constant 0 : index
    %c0_9 = arith.constant 0 : index
    %7 = vector.load %arg5[%c0_8, %c0_9] : memref<1x32xf32, #tpu.memory_space<vmem>>, vector<1x32xf32>
    %8 = vector.broadcast %7 : vector<1x32xf32> to vector<512x32xf32>
    %9 = arith.addf %6, %8 : vector<512x32xf32>
    %10 = math.tanh %9 : vector<512x32xf32>
    %c0_10 = arith.constant 0 : index
    %c0_11 = arith.constant 0 : index
    %11 = vector.load %arg6[%c0_10, %c0_11] : memref<32x32xf32, #tpu.memory_space<vmem>>, vector<32x32xf32>
    %cst_12 = arith.constant dense<0.000000e+00> : vector<512x32xf32>
    %12 = tpu.matmul %10, %11, %cst_12 {dimension_numbers = #tpu.dot_dimension_numbers<[1], [0], [0], [1], [0, 0, 1, 1], [], []>} : vector<512x32xf32>, vector<32x32xf32>, vector<512x32xf32> -> vector<512x32xf32>
    %c0_13 = arith.constant 0 : index
    %c0_14 = arith.constant 0 : index
    %13 = vector.load %arg7[%c0_13, %c0_14] : memref<1x32xf32, #tpu.memory_space<vmem>>, vector<1x32xf32>
    %14 = vector.broadcast %13 : vector<1x32xf32> to vector<512x32xf32>
    %15 = arith.addf %12, %14 : vector<512x32xf32>
    %16 = math.tanh %15 : vector<512x32xf32>
    %c0_15 = arith.constant 0 : index
    %c0_16 = arith.constant 0 : index
    %17 = vector.load %arg8[%c0_15, %c0_16] : memref<1x32xf32, #tpu.memory_space<vmem>>, vector<1x32xf32>
    %18 = tpu.transpose %16, [1, 0] : vector<512x32xf32> -> vector<32x512xf32>
    %cst_17 = arith.constant dense<0.000000e+00> : vector<1x512xf32>
    %19 = tpu.matmul %17, %18, %cst_17 {dimension_numbers = #tpu.dot_dimension_numbers<[1], [0], [0], [1], [0, 0, 1, 1], [], []>} : vector<1x32xf32>, vector<32x512xf32>, vector<1x512xf32> -> vector<1x512xf32>
    %c0_18 = arith.constant 0 : index
    %c0_19 = arith.constant 0 : index
    %20 = vector.load %arg9[%c0_18, %c0_19] : memref<1x1xf32, #tpu.memory_space<vmem>>, vector<1x1xf32>
    %21 = vector.broadcast %20 : vector<1x1xf32> to vector<1x512xf32>
    %22 = arith.addf %19, %21 : vector<1x512xf32>
    %c0_20 = arith.constant 0 : index
    %c0_21 = arith.constant 0 : index
    %23 = vector.load %arg10[%c0_20, %c0_21] : memref<1x512xf32, #tpu.memory_space<vmem>>, vector<1x512xf32>
    tpu.vector_store %arg10[%c0_20, %c0_21], %22 {strides = array<i32>} : memref<1x512xf32, #tpu.memory_space<vmem>>, vector<1x512xf32>,
    return
  }
  func.func @transform_0(%arg0: i32) -> (i32, i32) {
    %c0_i32 = arith.constant 0 : i32
    %c0_i32_0 = arith.constant 0 : i32
    return %arg0, %c0_i32 : i32, i32
  }
  func.func @transform_1(%arg0: i32) -> (i32, i32) {
    %c0_i32 = arith.constant 0 : i32
    %c0_i32_0 = arith.constant 0 : i32
    return %arg0, %c0_i32 : i32, i32
  }
  func.func @transform_2(%arg0: i32) -> (i32, i32) {
    %c0_i32 = arith.constant 0 : i32
    %c0_i32_0 = arith.constant 0 : i32
    %c0_i32_1 = arith.constant 0 : i32
    return %c0_i32, %c0_i32_0 : i32, i32
  }
  func.func @transform_3(%arg0: i32) -> (i32, i32) {
    %c0_i32 = arith.constant 0 : i32
    %c0_i32_0 = arith.constant 0 : i32
    %c0_i32_1 = arith.constant 0 : i32
    return %c0_i32, %c0_i32_0 : i32, i32
  }
  func.func @transform_4(%arg0: i32) -> (i32, i32) {
    %c0_i32 = arith.constant 0 : i32
    %c0_i32_0 = arith.constant 0 : i32
    %c0_i32_1 = arith.constant 0 : i32
    return %c0_i32, %c0_i32_0 : i32, i32
  }
  func.func @transform_5(%arg0: i32) -> (i32, i32) {
    %c0_i32 = arith.constant 0 : i32
    %c0_i32_0 = arith.constant 0 : i32
    %c0_i32_1 = arith.constant 0 : i32
    return %c0_i32, %c0_i32_0 : i32, i32
  }
  func.func @transform_6(%arg0: i32) -> (i32, i32) {
    %c0_i32 = arith.constant 0 : i32
    %c0_i32_0 = arith.constant 0 : i32
    %c0_i32_1 = arith.constant 0 : i32
    return %c0_i32, %c0_i32_0 : i32, i32
  }
  func.func @transform_7(%arg0: i32) -> (i32, i32) {
    %c0_i32 = arith.constant 0 : i32
    %c0_i32_0 = arith.constant 0 : i32
    %c0_i32_1 = arith.constant 0 : i32
    return %c0_i32, %c0_i32_0 : i32, i32
  }
  func.func @transform_8(%arg0: i32) -> (i32, i32) {
    %c0_i32 = arith.constant 0 : i32
    %c0_i32_0 = arith.constant 0 : i32
    %c0_i32_1 = arith.constant 0 : i32
    return %c0_i32, %c0_i32_0 : i32, i32
  }
  func.func @transform_9(%arg0: i32) -> (i32, i32) {
    %c0_i32 = arith.constant 0 : i32
    %c0_i32_0 = arith.constant 0 : i32
    return %c0_i32, %arg0 : i32, i32
  }
}

</mosaic_0001>

<llo_original>
// kernel: tpu_custom_call.1
$region0: #{tpu_custom_call.1}
  #allocation0 [shape = 'u32[]', space=smem, size = 0x4, offset = 0x4, fixed_abs, tag = 'smem constant byte address 0x4 - core index']
  #allocation1 [shape = 'u32[144,128]{1,0:T(1,128)}', space=vmem, size = 0x12000, scoped, tag = 'internal scratch']
  #allocation2 [shape = 'f32[1,1]{1,0:T(1,128)S(1)}', space=vmem, size = 0x200, scoped, tag = 'scoped memory for tpu_custom_call.1']
  %s0 = inlined_call_operand.vmem [shape: f32[1024,6], index: 0, kind: input, shape index: {}]
  %s1 = inlined_call_operand.vmem [shape: f32[1024,3], index: 1, kind: input, shape index: {}]
  %s2 = inlined_call_operand.vmem [shape: f32[6,32], index: 2, kind: input, shape index: {}]
  %s3 = inlined_call_operand.vmem [shape: f32[3,32], index: 3, kind: input, shape index: {}]
  %s4 = inlined_call_operand.vmem [shape: f32[1,32], index: 4, kind: input, shape index: {}]
  %s5 = inlined_call_operand.vmem [shape: f32[32,32], index: 5, kind: input, shape index: {}]
  %s6 = inlined_call_operand.vmem [shape: f32[1,32], index: 6, kind: input, shape index: {}]
  %s7 = inlined_call_operand.vmem [shape: f32[1,32], index: 7, kind: input, shape index: {}]
  %s8 = inlined_call_operand.<no memory space> [shape: f32[1,1], index: 8, kind: input, shape index: {}]
  %s9 = inlined_call_operand.hbm [shape: f32[1,1024], index: 9, kind: output, shape index: {}]
  %s10 = sld [smem:[#allocation0]]
  $region69: #{tpu_custom_call.1} parent=0
    _
  %s12 = ssub.s32 1, %s10
  %s13 = scalar_select 0, %s12, %s10
  %v14 = vstv %s8
  %15 = vst [vmem:[#allocation2] sm:$0x1] %v14
  $region1: #{tpu_custom_call.1} parent=0
    #allocation3 [shape = 'u8[4096]{0}', space=vmem, size = 0x1000, scoped, tag = 'output window, operand 0']
    #allocation4 [shape = 's32[2]{0}', space=sflag, size = 0x8, scoped, tag = 'scoped memory for tpu_custom_call.1']
    %16 = vsyncpa [#allocation4], 0
    %s17 = scalar_lea.sflag [#allocation4], 1
    %18 = vsyncpa %s17, 0
    loop: start=0, step=1, limit=4
    $region2: #{tpu_custom_call.1} parent=1 // loop_pre_header
      _
    $region3: #{tpu_custom_call.1} parent=1 // loop_header
      %s20 = sphi 0, %s24
      %p21 = scmp.ge.s32.totalorder %s20, 4
      %s30 = sphi 0, %s32
      %s33 = sphi 0, %s30
      %s34 = sphi 0, %s33
      %s50 = sphi 0, %s34
      %s56 = sphi 0, %s58
      %s59 = sphi 0, %s56
      %s60 = sphi 0, %s59
      %s76 = sphi 0, %s60
      %s80 = sphi 0, %s80
      %s82 = sphi 0, %s80
      %s83 = sphi 0, %s82
      %s97 = sphi 0, %s83
      %s101 = sphi 0, %s101
      %s103 = sphi 0, %s101
      %s104 = sphi 0, %s103
      %s118 = sphi 0, %s104
      %s122 = sphi 0, %s122
      %s124 = sphi 0, %s122
      %s125 = sphi 0, %s124
      %s139 = sphi 0, %s125
      %s143 = sphi 0, %s143
      %s145 = sphi 0, %s143
      %s146 = sphi 0, %s145
      %s160 = sphi 0, %s146
      %s164 = sphi 0, %s164
      %s166 = sphi 0, %s164
      %s167 = sphi 0, %s166
      %s181 = sphi 0, %s167
      %s185 = sphi 0, %s185
      %s187 = sphi 0, %s185
      %s188 = sphi 0, %s187
      %s202 = sphi 0, %s188
      %s206 = sphi 0, %s206
      %s208 = sphi 0, %s206
      %s209 = sphi 0, %s208
      %s223 = sphi 0, %s209
      %s229 = sphi 0, %s231
      %s232 = sphi 0, %s229
      %s233 = sphi 0, %s232
      %s249 = sphi 0, %s233
    $region4: #{tpu_custom_call.1} parent=1 // loop_header_branch
      %23 = sbr.rel (%p21) target = $region8
    $region5: #{tpu_custom_call.1} parent=1 // loop_body
      %s25 = ssub.s32 %s20, 1
      %s26 = ssub.s32 %s20, 2
      %s27 = sadd.s32 %s20, 1
      %s28 = ssub.s32 %s20, %s27
      %p29 = scmp.eq.s32.totalorder %s28, 0
      %s31 = sadd.s32 %s30, 1
      %s32 = scalar_select %p29, %s30, %s31
      %p35 = pneg %p29
      %p36 = scmp.eq.s32.totalorder %s20, 1
      %p37 = por %p35, %p36
      %p38 = scmp.ne.s32.totalorder %s30, %s33
      %p39 = scmp.eq.s32.totalorder %s20, 0
      %p40 = por %p38, %p39
      %p41 = scmp.ne.s32.totalorder %s30, %s33
      %p42 = scmp.eq.s32.totalorder %s25, 1
      %p43 = por %p41, %p42
      %p44 = scmp.ne.s32.totalorder %s33, %s34
      %p45 = scmp.eq.s32.totalorder %s25, 0
      %p46 = por %p44, %p45
      %p47 = scmp.ne.s32.totalorder %s33, %s34
      %p48 = scmp.eq.s32.totalorder %s26, 1
      %p49 = por %p47, %p48
      %p51 = scmp.ne.s32.totalorder %s34, %s50
      %p52 = scmp.eq.s32.totalorder %s26, 0
      %p53 = por %p51, %p52
      %s54 = ssub.s32 %s20, %s27
      %p55 = scmp.eq.s32.totalorder %s54, 0
      %s57 = sadd.s32 %s56, 1
      %s58 = scalar_select %p55, %s56, %s57
      %p61 = pneg %p55
      %p62 = scmp.eq.s32.totalorder %s20, 1
      %p63 = por %p61, %p62
      %p64 = scmp.ne.s32.totalorder %s56, %s59
      %p65 = scmp.eq.s32.totalorder %s20, 0
      %p66 = por %p64, %p65
      %p67 = scmp.ne.s32.totalorder %s56, %s59
      %p68 = scmp.eq.s32.totalorder %s25, 1
      %p69 = por %p67, %p68
      %p70 = scmp.ne.s32.totalorder %s59, %s60
      %p71 = scmp.eq.s32.totalorder %s25, 0
      %p72 = por %p70, %p71
      %p73 = scmp.ne.s32.totalorder %s59, %s60
      %p74 = scmp.eq.s32.totalorder %s26, 1
      %p75 = por %p73, %p74
      %p77 = scmp.ne.s32.totalorder %s60, %s76
      %p78 = scmp.eq.s32.totalorder %s26, 0
      %p79 = por %p77, %p78
      %s81 = sadd.s32 %s80, 1
      %p84 = scmp.eq.s32.totalorder %s20, 1
      %p85 = scmp.ne.s32.totalorder %s80, %s82
      %p86 = scmp.eq.s32.totalorder %s20, 0
      %p87 = por %p85, %p86
      %p88 = scmp.ne.s32.totalorder %s80, %s82
      %p89 = scmp.eq.s32.totalorder %s25, 1
      %p90 = por %p88, %p89
      %p91 = scmp.ne.s32.totalorder %s82, %s83
      %p92 = scmp.eq.s32.totalorder %s25, 0
      %p93 = por %p91, %p92
      %p94 = scmp.ne.s32.totalorder %s82, %s83
      %p95 = scmp.eq.s32.totalorder %s26, 1
      %p96 = por %p94, %p95
      %p98 = scmp.ne.s32.totalorder %s83, %s97
      %p99 = scmp.eq.s32.totalorder %s26, 0
      %p100 = por %p98, %p99
      %s102 = sadd.s32 %s101, 1
      %p105 = scmp.eq.s32.totalorder %s20, 1
      %p106 = scmp.ne.s32.totalorder %s101, %s103
      %p107 = scmp.eq.s32.totalorder %s20, 0
      %p108 = por %p106, %p107
      %p109 = scmp.ne.s32.totalorder %s101, %s103
      %p110 = scmp.eq.s32.totalorder %s25, 1
      %p111 = por %p109, %p110
      %p112 = scmp.ne.s32.totalorder %s103, %s104
      %p113 = scmp.eq.s32.totalorder %s25, 0
      %p114 = por %p112, %p113
      %p115 = scmp.ne.s32.totalorder %s103, %s104
      %p116 = scmp.eq.s32.totalorder %s26, 1
      %p117 = por %p115, %p116
      %p119 = scmp.ne.s32.totalorder %s104, %s118
      %p120 = scmp.eq.s32.totalorder %s26, 0
      %p121 = por %p119, %p120
      %s123 = sadd.s32 %s122, 1
      %p126 = scmp.eq.s32.totalorder %s20, 1
      %p127 = scmp.ne.s32.totalorder %s122, %s124
      %p128 = scmp.eq.s32.totalorder %s20, 0
      %p129 = por %p127, %p128
      %p130 = scmp.ne.s32.totalorder %s122, %s124
      %p131 = scmp.eq.s32.totalorder %s25, 1
      %p132 = por %p130, %p131
      %p133 = scmp.ne.s32.totalorder %s124, %s125
      %p134 = scmp.eq.s32.totalorder %s25, 0
      %p135 = por %p133, %p134
      %p136 = scmp.ne.s32.totalorder %s124, %s125
      %p137 = scmp.eq.s32.totalorder %s26, 1
      %p138 = por %p136, %p137
      %p140 = scmp.ne.s32.totalorder %s125, %s139
      %p141 = scmp.eq.s32.totalorder %s26, 0
      %p142 = por %p140, %p141
      %s144 = sadd.s32 %s143, 1
      %p147 = scmp.eq.s32.totalorder %s20, 1
      %p148 = scmp.ne.s32.totalorder %s143, %s145
      %p149 = scmp.eq.s32.totalorder %s20, 0
      %p150 = por %p148, %p149
      %p151 = scmp.ne.s32.totalorder %s143, %s145
      %p152 = scmp.eq.s32.totalorder %s25, 1
      %p153 = por %p151, %p152
      %p154 = scmp.ne.s32.totalorder %s145, %s146
      %p155 = scmp.eq.s32.totalorder %s25, 0
      %p156 = por %p154, %p155
      %p157 = scmp.ne.s32.totalorder %s145, %s146
      %p158 = scmp.eq.s32.totalorder %s26, 1
      %p159 = por %p157, %p158
      %p161 = scmp.ne.s32.totalorder %s146, %s160
      %p162 = scmp.eq.s32.totalorder %s26, 0
      %p163 = por %p161, %p162
      %s165 = sadd.s32 %s164, 1
      %p168 = scmp.eq.s32.totalorder %s20, 1
      %p169 = scmp.ne.s32.totalorder %s164, %s166
      %p170 = scmp.eq.s32.totalorder %s20, 0
      %p171 = por %p169, %p170
      %p172 = scmp.ne.s32.totalorder %s164, %s166
      %p173 = scmp.eq.s32.totalorder %s25, 1
      %p174 = por %p172, %p173
      %p175 = scmp.ne.s32.totalorder %s166, %s167
      %p176 = scmp.eq.s32.totalorder %s25, 0
      %p177 = por %p175, %p176
      %p178 = scmp.ne.s32.totalorder %s166, %s167
      %p179 = scmp.eq.s32.totalorder %s26, 1
      %p180 = por %p178, %p179
      %p182 = scmp.ne.s32.totalorder %s167, %s181
      %p183 = scmp.eq.s32.totalorder %s26, 0
      %p184 = por %p182, %p183
      %s186 = sadd.s32 %s185, 1
      %p189 = scmp.eq.s32.totalorder %s20, 1
      %p190 = scmp.ne.s32.totalorder %s185, %s187
      %p191 = scmp.eq.s32.totalorder %s20, 0
      %p192 = por %p190, %p191
      %p193 = scmp.ne.s32.totalorder %s185, %s187
      %p194 = scmp.eq.s32.totalorder %s25, 1
      %p195 = por %p193, %p194
      %p196 = scmp.ne.s32.totalorder %s187, %s188
      %p197 = scmp.eq.s32.totalorder %s25, 0
      %p198 = por %p196, %p197
      %p199 = scmp.ne.s32.totalorder %s187, %s188
      %p200 = scmp.eq.s32.totalorder %s26, 1
      %p201 = por %p199, %p200
      %p203 = scmp.ne.s32.totalorder %s188, %s202
      %p204 = scmp.eq.s32.totalorder %s26, 0
      %p205 = por %p203, %p204
      %s207 = sadd.s32 %s206, 1
      %p210 = scmp.eq.s32.totalorder %s20, 1
      %p211 = scmp.ne.s32.totalorder %s206, %s208
      %p212 = scmp.eq.s32.totalorder %s20, 0
      %p213 = por %p211, %p212
      %p214 = scmp.ne.s32.totalorder %s206, %s208
      %p215 = scmp.eq.s32.totalorder %s25, 1
      %p216 = por %p214, %p215
      %p217 = scmp.ne.s32.totalorder %s208, %s209
      %p218 = scmp.eq.s32.totalorder %s25, 0
      %p219 = por %p217, %p218
      %p220 = scmp.ne.s32.totalorder %s208, %s209
      %p221 = scmp.eq.s32.totalorder %s26, 1
      %p222 = por %p220, %p221
      %p224 = scmp.ne.s32.totalorder %s209, %s223
      %p225 = scmp.eq.s32.totalorder %s26, 0
      %p226 = por %p224, %p225
      %s227 = ssub.s32 %s20, %s27
      %p228 = scmp.eq.s32.totalorder %s227, 0
      %s230 = sadd.s32 %s229, 1
      %s231 = scalar_select %p228, %s229, %s230
      %p234 = pneg %p228
      %p235 = scmp.eq.s32.totalorder %s20, 1
      %p236 = por %p234, %p235
      %p237 = scmp.ne.s32.totalorder %s229, %s232
      %p238 = scmp.eq.s32.totalorder %s20, 0
      %p239 = por %p237, %p238
      %p240 = scmp.ne.s32.totalorder %s229, %s232
      %p241 = scmp.eq.s32.totalorder %s25, 1
      %p242 = por %p240, %p241
      %p243 = scmp.ne.s32.totalorder %s232, %s233
      %p244 = scmp.eq.s32.totalorder %s25, 0
      %p245 = por %p243, %p244
      %p246 = scmp.ne.s32.totalorder %s232, %s233
      %p247 = scmp.eq.s32.totalorder %s26, 1
      %p248 = por %p246, %p247
      %p250 = scmp.ne.s32.totalorder %s233, %s249
      %p251 = scmp.eq.s32.totalorder %s26, 0
      %p252 = por %p250, %p251
      %p253 = scmp.le.s32.totalorder 1, %s20
      %p254 = scmp.lt.s32.totalorder %s20, 3
      %p255 = pnand %p253, %p254
      %p256 = pneg %p255
      // Predicated region
      $region9: #{tpu_custom_call.1} parent=5 // pred_check
        _
      $region10: #{tpu_custom_call.1} parent=5 // pred_check_branch
        %258 = sbr.rel (%p255) target = $region12
      $region11: #{tpu_custom_call.1} parent=5 // pred_region
        %s259 = ssub.s32 %s20, 1
        // Predicated region
        $region13: #{tpu_custom_call.1} parent=11 // pred_check
          %p260 = pneg %p93
        $region14: #{tpu_custom_call.1} parent=11 // pred_check_branch
          %262 = sbr.rel (%p260) target = $region16
        $region15: #{tpu_custom_call.1} parent=11 // pred_region
          _
        $region16: #{tpu_custom_call.1} parent=11 // pred_fallthru
          _
        // Predicated region
        $region17: #{tpu_custom_call.1} parent=11 // pred_check
          %p263 = pneg %p114
        $region18: #{tpu_custom_call.1} parent=11 // pred_check_branch
          %265 = sbr.rel (%p263) target = $region20
        $region19: #{tpu_custom_call.1} parent=11 // pred_region
          _
        $region20: #{tpu_custom_call.1} parent=11 // pred_fallthru
          _
        // Predicated region
        $region21: #{tpu_custom_call.1} parent=11 // pred_check
          %p266 = pneg %p135
        $region22: #{tpu_custom_call.1} parent=11 // pred_check_branch
          %268 = sbr.rel (%p266) target = $region24
        $region23: #{tpu_custom_call.1} parent=11 // pred_region
          _
        $region24: #{tpu_custom_call.1} parent=11 // pred_fallthru
          _
        // Predicated region
        $region25: #{tpu_custom_call.1} parent=11 // pred_check
          %p269 = pneg %p156
        $region26: #{tpu_custom_call.1} parent=11 // pred_check_branch
          %271 = sbr.rel (%p269) target = $region28
        $region27: #{tpu_custom_call.1} parent=11 // pred_region
          _
        $region28: #{tpu_custom_call.1} parent=11 // pred_fallthru
          _
        // Predicated region
        $region29: #{tpu_custom_call.1} parent=11 // pred_check
          %p272 = pneg %p177
        $region30: #{tpu_custom_call.1} parent=11 // pred_check_branch
          %274 = sbr.rel (%p272) target = $region32
        $region31: #{tpu_custom_call.1} parent=11 // pred_region
          _
        $region32: #{tpu_custom_call.1} parent=11 // pred_fallthru
          _
        // Predicated region
        $region33: #{tpu_custom_call.1} parent=11 // pred_check
          %p275 = pneg %p198
        $region34: #{tpu_custom_call.1} parent=11 // pred_check_branch
          %277 = sbr.rel (%p275) target = $region36
        $region35: #{tpu_custom_call.1} parent=11 // pred_region
          _
        $region36: #{tpu_custom_call.1} parent=11 // pred_fallthru
          _
        // Predicated region
        $region37: #{tpu_custom_call.1} parent=11 // pred_check
          %p278 = pneg %p219
        $region38: #{tpu_custom_call.1} parent=11 // pred_check_branch
          %280 = sbr.rel (%p278) target = $region40
        $region39: #{tpu_custom_call.1} parent=11 // pred_region
          _
        $region40: #{tpu_custom_call.1} parent=11 // pred_fallthru
          _
      $region12: #{tpu_custom_call.1} parent=5 // pred_fallthru
        _
      %p281 = scmp.lt.s32.totalorder %s20, 2
      // Predicated region
      $region41: #{tpu_custom_call.1} parent=5 // pred_check
        %p282 = pneg %p281
      $region42: #{tpu_custom_call.1} parent=5 // pred_check_branch
        %284 = sbr.rel (%p282) target = $region44
      $region43: #{tpu_custom_call.1} parent=5 // pred_region
        // Predicated region
        $region45: #{tpu_custom_call.1} parent=43 // pred_check
          %p285 = pneg %p40
        $region46: #{tpu_custom_call.1} parent=43 // pred_check_branch
          %287 = sbr.rel (%p285) target = $region48
        $region47: #{tpu_custom_call.1} parent=43 // pred_region
          %s288 = smul.u32 64, %s20
          %p289 = scmp.lt.s32.totalorder %s288, 127
          %s290 = scalar_select %p289, %s288, 127
          %s291 = smul.addr %s290, 8
          %s292 = scalar_lea.vmem %s0, %s291
          %s293 = smul.u32 64, %s20
        $region48: #{tpu_custom_call.1} parent=43 // pred_fallthru
          _
        // Predicated region
        $region49: #{tpu_custom_call.1} parent=43 // pred_check
          %p294 = pneg %p66
        $region50: #{tpu_custom_call.1} parent=43 // pred_check_branch
          %296 = sbr.rel (%p294) target = $region52
        $region51: #{tpu_custom_call.1} parent=43 // pred_region
          %s297 = smul.u32 64, %s20
          %p298 = scmp.lt.s32.totalorder %s297, 127
          %s299 = scalar_select %p298, %s297, 127
          %s300 = smul.addr %s299, 8
          %s301 = scalar_lea.vmem %s1, %s300
          %s302 = smul.u32 64, %s20
        $region52: #{tpu_custom_call.1} parent=43 // pred_fallthru
          _
      $region44: #{tpu_custom_call.1} parent=5 // pred_fallthru
        _
      %p303 = scmp.le.s32.totalorder 1, %s20
      %p304 = scmp.lt.s32.totalorder %s20, 3
      %p305 = pnand %p303, %p304
      %p306 = pneg %p305
      // Predicated region
      $region53: #{tpu_custom_call.1} parent=5 // pred_check
        _
      $region54: #{tpu_custom_call.1} parent=5 // pred_check_branch
        %308 = sbr.rel (%p305) target = $region56
      $region55: #{tpu_custom_call.1} parent=5 // pred_region
        %s309 = ssub.s32 %s20, 1
        %s310 = smul.u32 64, %s25
        %p311 = scmp.lt.s32.totalorder %s310, 127
        %s312 = scalar_select %p311, %s310, 127
        %s313 = smul.addr %s312, 8
        %s314 = scalar_lea.vmem %s0, %s313
        %p315 = pneg %p46
        %p316 = pneg %p43
        %s317 = smul.u32 64, %s25
        %p318 = scmp.lt.s32.totalorder %s317, 127
        %s319 = scalar_select %p318, %s317, 127
        %s320 = smul.addr %s319, 8
        %s321 = scalar_lea.vmem %s1, %s320
        %p322 = pneg %p72
        %p323 = pneg %p69
        %p324 = pneg %p93
        %p325 = pneg %p90
        %p326 = pneg %p114
        %p327 = pneg %p111
        %p328 = pneg %p135
        %p329 = pneg %p132
        %p330 = pneg %p156
        %p331 = pneg %p153
        %p332 = pneg %p177
        %p333 = pneg %p174
        %p334 = pneg %p198
        %p335 = pneg %p195
        %p336 = pneg %p219
        %p337 = pneg %p216
        %p338 = pneg %p245
        %p339 = pneg %p242
        %s340 = sand.u32 %s232, 1
        %s341 = scalar_lea.sflag [#allocation4], %s340
        %s342 = sand.u32 %s232, 1
        %s343 = smul.addr %s342, 4
        %s344 = scalar_lea.vmem [#allocation3], %s343
        %s345 = smul.u32 64, %s25
        %p346 = scmp.lt.s32.totalorder %s345, 127
        %s347 = scalar_select %p346, %s345, 127
        %s348 = smul.addr %s347, 8
        %s349 = scalar_lea.vmem %s0, %s348
        %s350 = smul.u32 64, %s25
        %s351 = smul.u32 64, %s25
        %p352 = scmp.lt.s32.totalorder %s351, 127
        %s353 = scalar_select %p352, %s351, 127
        %s354 = smul.addr %s353, 8
        %s355 = scalar_lea.vmem %s1, %s354
        %s356 = smul.u32 64, %s25
        %s357 = smul.u32 4, %s25
        %v358 = vld [vmem:[%s349] sm:$0xff]
        %v359 = vld [vmem:[%s349 + $0x8] sm:$0xff]
        %v360 = vld [vmem:[%s349 + $0x10] sm:$0xff]
        %v361 = vld [vmem:[%s349 + $0x18] sm:$0xff]
        %v362 = vld [vmem:[%s349 + $0x20] sm:$0xff]
        %v363 = vld [vmem:[%s349 + $0x28] sm:$0xff]
        %v364 = vld [vmem:[%s349 + $0x30] sm:$0xff]
        %v365 = vld [vmem:[%s349 + $0x38] sm:$0xff]
        %v366 = vld [vmem:[%s349 + $0x40] sm:$0xff]
        %v367 = vld [vmem:[%s349 + $0x48] sm:$0xff]
        %v368 = vld [vmem:[%s349 + $0x50] sm:$0xff]
        %v369 = vld [vmem:[%s349 + $0x58] sm:$0xff]
        %v370 = vld [vmem:[%s349 + $0x60] sm:$0xff]
        %v371 = vld [vmem:[%s349 + $0x68] sm:$0xff]
        %v372 = vld [vmem:[%s349 + $0x70] sm:$0xff]
        %v373 = vld [vmem:[%s349 + $0x78] sm:$0xff]
        %v374 = vld [vmem:[%s349 + $0x80] sm:$0xff]
        %v375 = vld [vmem:[%s349 + $0x88] sm:$0xff]
        %v376 = vld [vmem:[%s349 + $0x90] sm:$0xff]
        %v377 = vld [vmem:[%s349 + $0x98] sm:$0xff]
        %v378 = vld [vmem:[%s349 + $0xa0] sm:$0xff]
        %v379 = vld [vmem:[%s349 + $0xa8] sm:$0xff]
        %v380 = vld [vmem:[%s349 + $0xb0] sm:$0xff]
        %v381 = vld [vmem:[%s349 + $0xb8] sm:$0xff]
        %v382 = vld [vmem:[%s349 + $0xc0] sm:$0xff]
        %v383 = vld [vmem:[%s349 + $0xc8] sm:$0xff]
        %v384 = vld [vmem:[%s349 + $0xd0] sm:$0xff]
        %v385 = vld [vmem:[%s349 + $0xd8] sm:$0xff]
        %v386 = vld [vmem:[%s349 + $0xe0] sm:$0xff]
        %v387 = vld [vmem:[%s349 + $0xe8] sm:$0xff]
        %v388 = vld [vmem:[%s349 + $0xf0] sm:$0xff]
        %v389 = vld [vmem:[%s349 + $0xf8] sm:$0xff]
        %v390 = vld [vmem:[%s349 + $0x100] sm:$0xff]
        %v391 = vld [vmem:[%s349 + $0x108] sm:$0xff]
        %v392 = vld [vmem:[%s349 + $0x110] sm:$0xff]
        %v393 = vld [vmem:[%s349 + $0x118] sm:$0xff]
        %v394 = vld [vmem:[%s349 + $0x120] sm:$0xff]
        %v395 = vld [vmem:[%s349 + $0x128] sm:$0xff]
        %v396 = vld [vmem:[%s349 + $0x130] sm:$0xff]
        %v397 = vld [vmem:[%s349 + $0x138] sm:$0xff]
        %v398 = vld [vmem:[%s349 + $0x140] sm:$0xff]
        %v399 = vld [vmem:[%s349 + $0x148] sm:$0xff]
        %v400 = vld [vmem:[%s349 + $0x150] sm:$0xff]
        %v401 = vld [vmem:[%s349 + $0x158] sm:$0xff]
        %v402 = vld [vmem:[%s349 + $0x160] sm:$0xff]
        %v403 = vld [vmem:[%s349 + $0x168] sm:$0xff]
        %v404 = vld [vmem:[%s349 + $0x170] sm:$0xff]
        %v405 = vld [vmem:[%s349 + $0x178] sm:$0xff]
        %v406 = vld [vmem:[%s349 + $0x180] sm:$0xff]
        %v407 = vld [vmem:[%s349 + $0x188] sm:$0xff]
        %v408 = vld [vmem:[%s349 + $0x190] sm:$0xff]
        %v409 = vld [vmem:[%s349 + $0x198] sm:$0xff]
        %v410 = vld [vmem:[%s349 + $0x1a0] sm:$0xff]
        %v411 = vld [vmem:[%s349 + $0x1a8] sm:$0xff]
        %v412 = vld [vmem:[%s349 + $0x1b0] sm:$0xff]
        %v413 = vld [vmem:[%s349 + $0x1b8] sm:$0xff]
        %v414 = vld [vmem:[%s349 + $0x1c0] sm:$0xff]
        %v415 = vld [vmem:[%s349 + $0x1c8] sm:$0xff]
        %v416 = vld [vmem:[%s349 + $0x1d0] sm:$0xff]
        %v417 = vld [vmem:[%s349 + $0x1d8] sm:$0xff]
        %v418 = vld [vmem:[%s349 + $0x1e0] sm:$0xff]
        %v419 = vld [vmem:[%s349 + $0x1e8] sm:$0xff]
        %v420 = vld [vmem:[%s349 + $0x1f0] sm:$0xff]
        %v421 = vld [vmem:[%s349 + $0x1f8] sm:$0xff]
        %v422 = vld [vmem:[%s2] sm:$0x3f]
        %v423 = vld [vmem:[%s355] sm:$0xff]
        %v424 = vld [vmem:[%s355 + $0x8] sm:$0xff]
        %v425 = vld [vmem:[%s355 + $0x10] sm:$0xff]
        %v426 = vld [vmem:[%s355 + $0x18] sm:$0xff]
        %v427 = vld [vmem:[%s355 + $0x20] sm:$0xff]
        %v428 = vld [vmem:[%s355 + $0x28] sm:$0xff]
        %v429 = vld [vmem:[%s355 + $0x30] sm:$0xff]
        %v430 = vld [vmem:[%s355 + $0x38] sm:$0xff]
        %v431 = vld [vmem:[%s355 + $0x40] sm:$0xff]
        %v432 = vld [vmem:[%s355 + $0x48] sm:$0xff]
        %v433 = vld [vmem:[%s355 + $0x50] sm:$0xff]
        %v434 = vld [vmem:[%s355 + $0x58] sm:$0xff]
        %v435 = vld [vmem:[%s355 + $0x60] sm:$0xff]
        %v436 = vld [vmem:[%s355 + $0x68] sm:$0xff]
        %v437 = vld [vmem:[%s355 + $0x70] sm:$0xff]
        %v438 = vld [vmem:[%s355 + $0x78] sm:$0xff]
        %v439 = vld [vmem:[%s355 + $0x80] sm:$0xff]
        %v440 = vld [vmem:[%s355 + $0x88] sm:$0xff]
        %v441 = vld [vmem:[%s355 + $0x90] sm:$0xff]
        %v442 = vld [vmem:[%s355 + $0x98] sm:$0xff]
        %v443 = vld [vmem:[%s355 + $0xa0] sm:$0xff]
        %v444 = vld [vmem:[%s355 + $0xa8] sm:$0xff]
        %v445 = vld [vmem:[%s355 + $0xb0] sm:$0xff]
        %v446 = vld [vmem:[%s355 + $0xb8] sm:$0xff]
        %v447 = vld [vmem:[%s355 + $0xc0] sm:$0xff]
        %v448 = vld [vmem:[%s355 + $0xc8] sm:$0xff]
        %v449 = vld [vmem:[%s355 + $0xd0] sm:$0xff]
        %v450 = vld [vmem:[%s355 + $0xd8] sm:$0xff]
        %v451 = vld [vmem:[%s355 + $0xe0] sm:$0xff]
        %v452 = vld [vmem:[%s355 + $0xe8] sm:$0xff]
        %v453 = vld [vmem:[%s355 + $0xf0] sm:$0xff]
        %v454 = vld [vmem:[%s355 + $0xf8] sm:$0xff]
        %v455 = vld [vmem:[%s355 + $0x100] sm:$0xff]
        %v456 = vld [vmem:[%s355 + $0x108] sm:$0xff]
        %v457 = vld [vmem:[%s355 + $0x110] sm:$0xff]
        %v458 = vld [vmem:[%s355 + $0x118] sm:$0xff]
        %v459 = vld [vmem:[%s355 + $0x120] sm:$0xff]
        %v460 = vld [vmem:[%s355 + $0x128] sm:$0xff]
        %v461 = vld [vmem:[%s355 + $0x130] sm:$0xff]
        %v462 = vld [vmem:[%s355 + $0x138] sm:$0xff]
        %v463 = vld [vmem:[%s355 + $0x140] sm:$0xff]
        %v464 = vld [vmem:[%s355 + $0x148] sm:$0xff]
        %v465 = vld [vmem:[%s355 + $0x150] sm:$0xff]
        %v466 = vld [vmem:[%s355 + $0x158] sm:$0xff]
        %v467 = vld [vmem:[%s355 + $0x160] sm:$0xff]
        %v468 = vld [vmem:[%s355 + $0x168] sm:$0xff]
        %v469 = vld [vmem:[%s355 + $0x170] sm:$0xff]
        %v470 = vld [vmem:[%s355 + $0x178] sm:$0xff]
        %v471 = vld [vmem:[%s355 + $0x180] sm:$0xff]
        %v472 = vld [vmem:[%s355 + $0x188] sm:$0xff]
        %v473 = vld [vmem:[%s355 + $0x190] sm:$0xff]
        %v474 = vld [vmem:[%s355 + $0x198] sm:$0xff]
        %v475 = vld [vmem:[%s355 + $0x1a0] sm:$0xff]
        %v476 = vld [vmem:[%s355 + $0x1a8] sm:$0xff]
        %v477 = vld [vmem:[%s355 + $0x1b0] sm:$0xff]
        %v478 = vld [vmem:[%s355 + $0x1b8] sm:$0xff]
        %v479 = vld [vmem:[%s355 + $0x1c0] sm:$0xff]
        %v480 = vld [vmem:[%s355 + $0x1c8] sm:$0xff]
        %v481 = vld [vmem:[%s355 + $0x1d0] sm:$0xff]
        %v482 = vld [vmem:[%s355 + $0x1d8] sm:$0xff]
        %v483 = vld [vmem:[%s355 + $0x1e0] sm:$0xff]
        %v484 = vld [vmem:[%s355 + $0x1e8] sm:$0xff]
        %v485 = vld [vmem:[%s355 + $0x1f0] sm:$0xff]
        %v486 = vld [vmem:[%s355 + $0x1f8] sm:$0xff]
        %v487 = vld [vmem:[%s3] sm:$0x7]
        %vm488 = vcmask 23552
        %v490 = vsel %vm488, %v423, 0
        %v493 = vsel %vm488, %v424, 0
        %v496 = vsel %vm488, %v425, 0
        %v499 = vsel %vm488, %v426, 0
        %v502 = vsel %vm488, %v427, 0
        %v505 = vsel %vm488, %v428, 0
        %v508 = vsel %vm488, %v429, 0
        %v511 = vsel %vm488, %v430, 0
        %v514 = vsel %vm488, %v431, 0
        %v517 = vsel %vm488, %v432, 0
        %v520 = vsel %vm488, %v433, 0
        %v523 = vsel %vm488, %v434, 0
        %v526 = vsel %vm488, %v435, 0
        %v529 = vsel %vm488, %v436, 0
        %v532 = vsel %vm488, %v437, 0
        %v535 = vsel %vm488, %v438, 0
        %v538 = vsel %vm488, %v439, 0
        %v541 = vsel %vm488, %v440, 0
        %v544 = vsel %vm488, %v441, 0
        %v547 = vsel %vm488, %v442, 0
        %v550 = vsel %vm488, %v443, 0
        %v553 = vsel %vm488, %v444, 0
        %v556 = vsel %vm488, %v445, 0
        %v559 = vsel %vm488, %v446, 0
        %v562 = vsel %vm488, %v447, 0
        %v565 = vsel %vm488, %v448, 0
        %v568 = vsel %vm488, %v449, 0
        %v571 = vsel %vm488, %v450, 0
        %v574 = vsel %vm488, %v451, 0
        %v577 = vsel %vm488, %v452, 0
        %v580 = vsel %vm488, %v453, 0
        %v583 = vsel %vm488, %v454, 0
        %v586 = vsel %vm488, %v455, 0
        %v589 = vsel %vm488, %v456, 0
        %v592 = vsel %vm488, %v457, 0
        %v595 = vsel %vm488, %v458, 0
        %v598 = vsel %vm488, %v459, 0
        %v601 = vsel %vm488, %v460, 0
        %v604 = vsel %vm488, %v461, 0
        %v607 = vsel %vm488, %v462, 0
        %v610 = vsel %vm488, %v463, 0
        %v613 = vsel %vm488, %v464, 0
        %v616 = vsel %vm488, %v465, 0
        %v619 = vsel %vm488, %v466, 0
        %v622 = vsel %vm488, %v467, 0
        %v625 = vsel %vm488, %v468, 0
        %v628 = vsel %vm488, %v469, 0
        %v631 = vsel %vm488, %v470, 0
        %v634 = vsel %vm488, %v471, 0
        %v637 = vsel %vm488, %v472, 0
        %v640 = vsel %vm488, %v473, 0
        %v643 = vsel %vm488, %v474, 0
        %v646 = vsel %vm488, %v475, 0
        %v649 = vsel %vm488, %v476, 0
        %v652 = vsel %vm488, %v477, 0
        %v655 = vsel %vm488, %v478, 0
        %v658 = vsel %vm488, %v479, 0
        %v661 = vsel %vm488, %v480, 0
        %v664 = vsel %vm488, %v481, 0
        %v667 = vsel %vm488, %v482, 0
        %v670 = vsel %vm488, %v483, 0
        %v673 = vsel %vm488, %v484, 0
        %v676 = vsel %vm488, %v485, 0
        %v679 = vsel %vm488, %v486, 0
        %vm681 = vcmask 1042432
        %v683 = vsel %vm681, %v487, 0
        %685 = vmatprep.subr.mxu0 0.0
        %686 = vmatpush1.msra.mxu0 %v683
        %687 = vmatprep.subr.mxu0 0.0
        %688 = vmatpush1.msra.mxu0 0.0
        %689 = vmatprep.subr.mxu0 0.0
        %690 = vmatpush1.msra.mxu0 0.0
        %691 = vmatprep.subr.mxu0 0.0
        %692 = vmatpush1.msra.mxu0 0.0
        %693 = vmatprep.subr.mxu0 0.0
        %694 = vmatpush1.msra.mxu0 0.0
        %695 = vmatprep.subr.mxu0 0.0
        %696 = vmatpush1.msra.mxu0 0.0
        %697 = vmatprep.subr.mxu0 0.0
        %698 = vmatpush1.msra.mxu0 0.0
        %699 = vmatprep.subr.mxu0 0.0
        %700 = vmatpush1.msra.mxu0 0.0
        %701 = vmatprep.subr.mxu0 0.0
        %702 = vmatpush1.msra.mxu0 0.0
        %703 = vmatprep.subr.mxu0 0.0
        %704 = vmatpush1.msra.mxu0 0.0
        %705 = vmatprep.subr.mxu0 0.0
        %706 = vmatpush1.msra.mxu0 0.0
        %707 = vmatprep.subr.mxu0 0.0
        %708 = vmatpush1.msra.mxu0 0.0
        %709 = vmatprep.subr.mxu0 0.0
        %710 = vmatpush1.msra.mxu0 0.0
        %711 = vmatprep.subr.mxu0 0.0
        %712 = vmatpush1.msra.mxu0 0.0
        %713 = vmatprep.subr.mxu0 0.0
        %714 = vmatpush1.msra.mxu0 0.0
        %715 = vmatprep.subr.mxu0 0.0
        %716 = vmatpush1.msra.mxu0 0.0
        %717 = vmatprep.subr.mxu0 0.0
        %718 = vmatpush1.msra.mxu0 0.0
        %719 = vmatprep.subr.mxu0 0.0
        %720 = vmatpush1.msra.mxu0 0.0
        %721 = vmatprep.subr.mxu0 0.0
        %722 = vmatpush1.msra.mxu0 0.0
        %723 = vmatprep.subr.mxu0 0.0
        %724 = vmatpush1.msra.mxu0 0.0
        %725 = vmatprep.subr.mxu0 0.0
        %726 = vmatpush1.msra.mxu0 0.0
        %727 = vmatprep.subr.mxu0 0.0
        %728 = vmatpush1.msra.mxu0 0.0
        %729 = vmatprep.subr.mxu0 0.0
        %730 = vmatpush1.msra.mxu0 0.0
        %731 = vmatprep.subr.mxu0 0.0
        %732 = vmatpush1.msra.mxu0 0.0
        %733 = vmatprep.subr.mxu0 0.0
        %734 = vmatpush1.msra.mxu0 0.0
        %735 = vmatprep.subr.mxu0 0.0
        %736 = vmatpush1.msra.mxu0 0.0
        %737 = vmatprep.subr.mxu0 0.0
        %738 = vmatpush1.msra.mxu0 0.0
        %739 = vmatprep.subr.mxu0 0.0
        %740 = vmatpush1.msra.mxu0 0.0
        %741 = vmatprep.subr.mxu0 0.0
        %742 = vmatpush1.msra.mxu0 0.0
        %743 = vmatprep.subr.mxu0 0.0
        %744 = vmatpush1.msra.mxu0 0.0
        %745 = vmatprep.subr.mxu0 0.0
        %746 = vmatpush1.msra.mxu0 0.0
        %747 = vmatprep.subr.mxu0 0.0
        %748 = vmatpush1.msra.mxu0 0.0
        %749 = vmatprep.mubr.f32.mxu0 0.0
        %750 = vmatmul.mubr.f32.gmra.mrb[0].mxu0 %v490
        %v751 = vpop.f32.mrb[0].mxu0
        %v752 = vadd.f32 0.0, %v751
        %v753 = vpop.f32.mrb[0].mxu0
        %754 = vmatprep.mubr.f32.mxu0 0.0
        %755 = vmatmul.mubr.f32.gmra.mrb[0].mxu0 %v493
        %v756 = vpop.f32.mrb[0].mxu0
        %v757 = vadd.f32 0.0, %v756
        %v758 = vpop.f32.mrb[0].mxu0
        %759 = vmatprep.mubr.f32.mxu0 0.0
        %760 = vmatmul.mubr.f32.gmra.mrb[0].mxu0 %v496
        %v761 = vpop.f32.mrb[0].mxu0
        %v762 = vadd.f32 0.0, %v761
        %v763 = vpop.f32.mrb[0].mxu0
        %764 = vmatprep.mubr.f32.mxu0 0.0
        %765 = vmatmul.mubr.f32.gmra.mrb[0].mxu0 %v499
        %v766 = vpop.f32.mrb[0].mxu0
        %v767 = vadd.f32 0.0, %v766
        %v768 = vpop.f32.mrb[0].mxu0
        %769 = vmatprep.mubr.f32.mxu0 0.0
        %770 = vmatmul.mubr.f32.gmra.mrb[0].mxu0 %v502
        %v771 = vpop.f32.mrb[0].mxu0
        %v772 = vadd.f32 0.0, %v771
        %v773 = vpop.f32.mrb[0].mxu0
        %774 = vmatprep.mubr.f32.mxu0 0.0
        %775 = vmatmul.mubr.f32.gmra.mrb[0].mxu0 %v505
        %v776 = vpop.f32.mrb[0].mxu0
        %v777 = vadd.f32 0.0, %v776
        %v778 = vpop.f32.mrb[0].mxu0
        %779 = vmatprep.mubr.f32.mxu0 0.0
        %780 = vmatmul.mubr.f32.gmra.mrb[0].mxu0 %v508
        %v781 = vpop.f32.mrb[0].mxu0
        %v782 = vadd.f32 0.0, %v781
        %v783 = vpop.f32.mrb[0].mxu0
        %784 = vmatprep.mubr.f32.mxu0 0.0
        %785 = vmatmul.mubr.f32.gmra.mrb[0].mxu0 %v511
        %v786 = vpop.f32.mrb[0].mxu0
        %v787 = vadd.f32 0.0, %v786
        %v788 = vpop.f32.mrb[0].mxu0
        %789 = vmatprep.mubr.f32.mxu0 0.0
        %790 = vmatmul.mubr.f32.gmra.mrb[0].mxu0 %v514
        %v791 = vpop.f32.mrb[0].mxu0
        %v792 = vadd.f32 0.0, %v791
        %v793 = vpop.f32.mrb[0].mxu0
        %794 = vmatprep.mubr.f32.mxu0 0.0
        %795 = vmatmul.mubr.f32.gmra.mrb[0].mxu0 %v517
        %v796 = vpop.f32.mrb[0].mxu0
        %v797 = vadd.f32 0.0, %v796
        %v798 = vpop.f32.mrb[0].mxu0
        %799 = vmatprep.mubr.f32.mxu0 0.0
        %800 = vmatmul.mubr.f32.gmra.mrb[0].mxu0 %v520
        %v801 = vpop.f32.mrb[0].mxu0
        %v802 = vadd.f32 0.0, %v801
        %v803 = vpop.f32.mrb[0].mxu0
        %804 = vmatprep.mubr.f32.mxu0 0.0
        %805 = vmatmul.mubr.f32.gmra.mrb[0].mxu0 %v523
        %v806 = vpop.f32.mrb[0].mxu0
        %v807 = vadd.f32 0.0, %v806
        %v808 = vpop.f32.mrb[0].mxu0
        %809 = vmatprep.mubr.f32.mxu0 0.0
        %810 = vmatmul.mubr.f32.gmra.mrb[0].mxu0 %v526
        %v811 = vpop.f32.mrb[0].mxu0
        %v812 = vadd.f32 0.0, %v811
        %v813 = vpop.f32.mrb[0].mxu0
        %814 = vmatprep.mubr.f32.mxu0 0.0
        %815 = vmatmul.mubr.f32.gmra.mrb[0].mxu0 %v529
        %v816 = vpop.f32.mrb[0].mxu0
        %v817 = vadd.f32 0.0, %v816
        %v818 = vpop.f32.mrb[0].mxu0
        %819 = vmatprep.mubr.f32.mxu0 0.0
        %820 = vmatmul.mubr.f32.gmra.mrb[0].mxu0 %v532
        %v821 = vpop.f32.mrb[0].mxu0
        %v822 = vadd.f32 0.0, %v821
        %v823 = vpop.f32.mrb[0].mxu0
        %824 = vmatprep.mubr.f32.mxu0 0.0
        %825 = vmatmul.mubr.f32.gmra.mrb[0].mxu0 %v535
        %v826 = vpop.f32.mrb[0].mxu0
        %v827 = vadd.f32 0.0, %v826
        %v828 = vpop.f32.mrb[0].mxu0
        %829 = vmatprep.mubr.f32.mxu0 0.0
        %830 = vmatmul.mubr.f32.gmra.mrb[0].mxu0 %v538
        %v831 = vpop.f32.mrb[0].mxu0
        %v832 = vadd.f32 0.0, %v831
        %v833 = vpop.f32.mrb[0].mxu0
        %834 = vmatprep.mubr.f32.mxu0 0.0
        %835 = vmatmul.mubr.f32.gmra.mrb[0].mxu0 %v541
        %v836 = vpop.f32.mrb[0].mxu0
        %v837 = vadd.f32 0.0, %v836
        %v838 = vpop.f32.mrb[0].mxu0
        %839 = vmatprep.mubr.f32.mxu0 0.0
        %840 = vmatmul.mubr.f32.gmra.mrb[0].mxu0 %v544
        %v841 = vpop.f32.mrb[0].mxu0
        %v842 = vadd.f32 0.0, %v841
        %v843 = vpop.f32.mrb[0].mxu0
        %844 = vmatprep.mubr.f32.mxu0 0.0
        %845 = vmatmul.mubr.f32.gmra.mrb[0].mxu0 %v547
        %v846 = vpop.f32.mrb[0].mxu0
        %v847 = vadd.f32 0.0, %v846
        %v848 = vpop.f32.mrb[0].mxu0
        %849 = vmatprep.mubr.f32.mxu0 0.0
        %850 = vmatmul.mubr.f32.gmra.mrb[0].mxu0 %v550
        %v851 = vpop.f32.mrb[0].mxu0
        %v852 = vadd.f32 0.0, %v851
        %v853 = vpop.f32.mrb[0].mxu0
        %854 = vmatprep.mubr.f32.mxu0 0.0
        %855 = vmatmul.mubr.f32.gmra.mrb[0].mxu0 %v553
        %v856 = vpop.f32.mrb[0].mxu0
        %v857 = vadd.f32 0.0, %v856
        %v858 = vpop.f32.mrb[0].mxu0
        %859 = vmatprep.mubr.f32.mxu0 0.0
        %860 = vmatmul.mubr.f32.gmra.mrb[0].mxu0 %v556
        %v861 = vpop.f32.mrb[0].mxu0
        %v862 = vadd.f32 0.0, %v861
        %v863 = vpop.f32.mrb[0].mxu0
        %864 = vmatprep.mubr.f32.mxu0 0.0
        %865 = vmatmul.mubr.f32.gmra.mrb[0].mxu0 %v559
        %v866 = vpop.f32.mrb[0].mxu0
        %v867 = vadd.f32 0.0, %v866
        %v868 = vpop.f32.mrb[0].mxu0
        %869 = vmatprep.mubr.f32.mxu0 0.0
        %870 = vmatmul.mubr.f32.gmra.mrb[0].mxu0 %v562
        %v871 = vpop.f32.mrb[0].mxu0
        %v872 = vadd.f32 0.0, %v871
        %v873 = vpop.f32.mrb[0].mxu0
        %874 = vmatprep.mubr.f32.mxu0 0.0
        %875 = vmatmul.mubr.f32.gmra.mrb[0].mxu0 %v565
        %v876 = vpop.f32.mrb[0].mxu0
        %v877 = vadd.f32 0.0, %v876
        %v878 = vpop.f32.mrb[0].mxu0
        %879 = vmatprep.mubr.f32.mxu0 0.0
        %880 = vmatmul.mubr.f32.gmra.mrb[0].mxu0 %v568
        %v881 = vpop.f32.mrb[0].mxu0
        %v882 = vadd.f32 0.0, %v881
        %v883 = vpop.f32.mrb[0].mxu0
        %884 = vmatprep.mubr.f32.mxu0 0.0
        %885 = vmatmul.mubr.f32.gmra.mrb[0].mxu0 %v571
        %v886 = vpop.f32.mrb[0].mxu0
        %v887 = vadd.f32 0.0, %v886
        %v888 = vpop.f32.mrb[0].mxu0
        %889 = vmatprep.mubr.f32.mxu0 0.0
        %890 = vmatmul.mubr.f32.gmra.mrb[0].mxu0 %v574
        %v891 = vpop.f32.mrb[0].mxu0
        %v892 = vadd.f32 0.0, %v891
        %v893 = vpop.f32.mrb[0].mxu0
        %894 = vmatprep.mubr.f32.mxu0 0.0
        %895 = vmatmul.mubr.f32.gmra.mrb[0].mxu0 %v577
        %v896 = vpop.f32.mrb[0].mxu0
        %v897 = vadd.f32 0.0, %v896
        %v898 = vpop.f32.mrb[0].mxu0
        %899 = vmatprep.mubr.f32.mxu0 0.0
        %900 = vmatmul.mubr.f32.gmra.mrb[0].mxu0 %v580
        %v901 = vpop.f32.mrb[0].mxu0
        %v902 = vadd.f32 0.0, %v901
        %v903 = vpop.f32.mrb[0].mxu0
        %904 = vmatprep.mubr.f32.mxu0 0.0
        %905 = vmatmul.mubr.f32.gmra.mrb[0].mxu0 %v583
        %v906 = vpop.f32.mrb[0].mxu0
        %v907 = vadd.f32 0.0, %v906
        %v908 = vpop.f32.mrb[0].mxu0
        %909 = vmatprep.mubr.f32.mxu0 0.0
        %910 = vmatmul.mubr.f32.gmra.mrb[0].mxu0 %v586
        %v911 = vpop.f32.mrb[0].mxu0
        %v912 = vadd.f32 0.0, %v911
        %v913 = vpop.f32.mrb[0].mxu0
        %914 = vmatprep.mubr.f32.mxu0 0.0
        %915 = vmatmul.mubr.f32.gmra.mrb[0].mxu0 %v589
        %v916 = vpop.f32.mrb[0].mxu0
        %v917 = vadd.f32 0.0, %v916
        %v918 = vpop.f32.mrb[0].mxu0
        %919 = vmatprep.mubr.f32.mxu0 0.0
        %920 = vmatmul.mubr.f32.gmra.mrb[0].mxu0 %v592
        %v921 = vpop.f32.mrb[0].mxu0
        %v922 = vadd.f32 0.0, %v921
        %v923 = vpop.f32.mrb[0].mxu0
        %924 = vmatprep.mubr.f32.mxu0 0.0
        %925 = vmatmul.mubr.f32.gmra.mrb[0].mxu0 %v595
        %v926 = vpop.f32.mrb[0].mxu0
        %v927 = vadd.f32 0.0, %v926
        %v928 = vpop.f32.mrb[0].mxu0
        %929 = vmatprep.mubr.f32.mxu0 0.0
        %930 = vmatmul.mubr.f32.gmra.mrb[0].mxu0 %v598
        %v931 = vpop.f32.mrb[0].mxu0
        %v932 = vadd.f32 0.0, %v931
        %v933 = vpop.f32.mrb[0].mxu0
        %934 = vmatprep.mubr.f32.mxu0 0.0
        %935 = vmatmul.mubr.f32.gmra.mrb[0].mxu0 %v601
        %v936 = vpop.f32.mrb[0].mxu0
        %v937 = vadd.f32 0.0, %v936
        %v938 = vpop.f32.mrb[0].mxu0
        %939 = vmatprep.mubr.f32.mxu0 0.0
        %940 = vmatmul.mubr.f32.gmra.mrb[0].mxu0 %v604
        %v941 = vpop.f32.mrb[0].mxu0
        %v942 = vadd.f32 0.0, %v941
        %v943 = vpop.f32.mrb[0].mxu0
        %944 = vmatprep.mubr.f32.mxu0 0.0
        %945 = vmatmul.mubr.f32.gmra.mrb[0].mxu0 %v607
        %v946 = vpop.f32.mrb[0].mxu0
        %v947 = vadd.f32 0.0, %v946
        %v948 = vpop.f32.mrb[0].mxu0
        %949 = vmatprep.mubr.f32.mxu0 0.0
        %950 = vmatmul.mubr.f32.gmra.mrb[0].mxu0 %v610
        %v951 = vpop.f32.mrb[0].mxu0
        %v952 = vadd.f32 0.0, %v951
        %v953 = vpop.f32.mrb[0].mxu0
        %954 = vmatprep.mubr.f32.mxu0 0.0
        %955 = vmatmul.mubr.f32.gmra.mrb[0].mxu0 %v613
        %v956 = vpop.f32.mrb[0].mxu0
        %v957 = vadd.f32 0.0, %v956
        %v958 = vpop.f32.mrb[0].mxu0
        %959 = vmatprep.mubr.f32.mxu0 0.0
        %960 = vmatmul.mubr.f32.gmra.mrb[0].mxu0 %v616
        %v961 = vpop.f32.mrb[0].mxu0
        %v962 = vadd.f32 0.0, %v961
        %v963 = vpop.f32.mrb[0].mxu0
        %964 = vmatprep.mubr.f32.mxu0 0.0
        %965 = vmatmul.mubr.f32.gmra.mrb[0].mxu0 %v619
        %v966 = vpop.f32.mrb[0].mxu0
        %v967 = vadd.f32 0.0, %v966
        %v968 = vpop.f32.mrb[0].mxu0
        %969 = vmatprep.mubr.f32.mxu0 0.0
        %970 = vmatmul.mubr.f32.gmra.mrb[0].mxu0 %v622
        %v971 = vpop.f32.mrb[0].mxu0
        %v972 = vadd.f32 0.0, %v971
        %v973 = vpop.f32.mrb[0].mxu0
        %974 = vmatprep.mubr.f32.mxu0 0.0
        %975 = vmatmul.mubr.f32.gmra.mrb[0].mxu0 %v625
        %v976 = vpop.f32.mrb[0].mxu0
        %v977 = vadd.f32 0.0, %v976
        %v978 = vpop.f32.mrb[0].mxu0
        %979 = vmatprep.mubr.f32.mxu0 0.0
        %980 = vmatmul.mubr.f32.gmra.mrb[0].mxu0 %v628
        %v981 = vpop.f32.mrb[0].mxu0
        %v982 = vadd.f32 0.0, %v981
        %v983 = vpop.f32.mrb[0].mxu0
        %984 = vmatprep.mubr.f32.mxu0 0.0
        %985 = vmatmul.mubr.f32.gmra.mrb[0].mxu0 %v631
        %v986 = vpop.f32.mrb[0].mxu0
        %v987 = vadd.f32 0.0, %v986
        %v988 = vpop.f32.mrb[0].mxu0
        %989 = vmatprep.mubr.f32.mxu0 0.0
        %990 = vmatmul.mubr.f32.gmra.mrb[0].mxu0 %v634
        %v991 = vpop.f32.mrb[0].mxu0
        %v992 = vadd.f32 0.0, %v991
        %v993 = vpop.f32.mrb[0].mxu0
        %994 = vmatprep.mubr.f32.mxu0 0.0
        %995 = vmatmul.mubr.f32.gmra.mrb[0].mxu0 %v637
        %v996 = vpop.f32.mrb[0].mxu0
        %v997 = vadd.f32 0.0, %v996
        %v998 = vpop.f32.mrb[0].mxu0
        %999 = vmatprep.mubr.f32.mxu0 0.0
        %1000 = vmatmul.mubr.f32.gmra.mrb[0].mxu0 %v640
        %v1001 = vpop.f32.mrb[0].mxu0
        %v1002 = vadd.f32 0.0, %v1001
        %v1003 = vpop.f32.mrb[0].mxu0
        %1004 = vmatprep.mubr.f32.mxu0 0.0
        %1005 = vmatmul.mubr.f32.gmra.mrb[0].mxu0 %v643
        %v1006 = vpop.f32.mrb[0].mxu0
        %v1007 = vadd.f32 0.0, %v1006
        %v1008 = vpop.f32.mrb[0].mxu0
        %1009 = vmatprep.mubr.f32.mxu0 0.0
        %1010 = vmatmul.mubr.f32.gmra.mrb[0].mxu0 %v646
        %v1011 = vpop.f32.mrb[0].mxu0
        %v1012 = vadd.f32 0.0, %v1011
        %v1013 = vpop.f32.mrb[0].mxu0
        %1014 = vmatprep.mubr.f32.mxu0 0.0
        %1015 = vmatmul.mubr.f32.gmra.mrb[0].mxu0 %v649
        %v1016 = vpop.f32.mrb[0].mxu0
        %v1017 = vadd.f32 0.0, %v1016
        %v1018 = vpop.f32.mrb[0].mxu0
        %1019 = vmatprep.mubr.f32.mxu0 0.0
        %1020 = vmatmul.mubr.f32.gmra.mrb[0].mxu0 %v652
        %v1021 = vpop.f32.mrb[0].mxu0
        %v1022 = vadd.f32 0.0, %v1021
        %v1023 = vpop.f32.mrb[0].mxu0
        %1024 = vmatprep.mubr.f32.mxu0 0.0
        %1025 = vmatmul.mubr.f32.gmra.mrb[0].mxu0 %v655
        %v1026 = vpop.f32.mrb[0].mxu0
        %v1027 = vadd.f32 0.0, %v1026
        %v1028 = vpop.f32.mrb[0].mxu0
        %1029 = vmatprep.mubr.f32.mxu0 0.0
        %1030 = vmatmul.mubr.f32.gmra.mrb[0].mxu0 %v658
        %v1031 = vpop.f32.mrb[0].mxu0
        %v1032 = vadd.f32 0.0, %v1031
        %v1033 = vpop.f32.mrb[0].mxu0
        %1034 = vmatprep.mubr.f32.mxu0 0.0
        %1035 = vmatmul.mubr.f32.gmra.mrb[0].mxu0 %v661
        %v1036 = vpop.f32.mrb[0].mxu0
        %v1037 = vadd.f32 0.0, %v1036
        %v1038 = vpop.f32.mrb[0].mxu0
        %1039 = vmatprep.mubr.f32.mxu0 0.0
        %1040 = vmatmul.mubr.f32.gmra.mrb[0].mxu0 %v664
        %v1041 = vpop.f32.mrb[0].mxu0
        %v1042 = vadd.f32 0.0, %v1041
        %v1043 = vpop.f32.mrb[0].mxu0
        %1044 = vmatprep.mubr.f32.mxu0 0.0
        %1045 = vmatmul.mubr.f32.gmra.mrb[0].mxu0 %v667
        %v1046 = vpop.f32.mrb[0].mxu0
        %v1047 = vadd.f32 0.0, %v1046
        %v1048 = vpop.f32.mrb[0].mxu0
        %1049 = vmatprep.mubr.f32.mxu0 0.0
        %1050 = vmatmul.mubr.f32.gmra.mrb[0].mxu0 %v670
        %v1051 = vpop.f32.mrb[0].mxu0
        %v1052 = vadd.f32 0.0, %v1051
        %v1053 = vpop.f32.mrb[0].mxu0
        %1054 = vmatprep.mubr.f32.mxu0 0.0
        %1055 = vmatmul.mubr.f32.gmra.mrb[0].mxu0 %v673
        %v1056 = vpop.f32.mrb[0].mxu0
        %v1057 = vadd.f32 0.0, %v1056
        %v1058 = vpop.f32.mrb[0].mxu0
        %1059 = vmatprep.mubr.f32.mxu0 0.0
        %1060 = vmatmul.mubr.f32.gmra.mrb[0].mxu0 %v676
        %v1061 = vpop.f32.mrb[0].mxu0
        %v1062 = vadd.f32 0.0, %v1061
        %v1063 = vpop.f32.mrb[0].mxu0
        %1064 = vmatprep.mubr.f32.mxu0 0.0
        %1065 = vmatmul.mubr.f32.gmra.mrb[0].mxu0 %v679
        %v1066 = vpop.f32.mrb[0].mxu0
        %v1067 = vadd.f32 0.0, %v1066
        %v1068 = vpop.f32.mrb[0].mxu0
        %1069 = vdwg.mxu0
        %vm1070 = vcmask 48128
        %v1072 = vsel %vm1070, %v358, 0
        %v1075 = vsel %vm1070, %v359, 0
        %v1078 = vsel %vm1070, %v360, 0
        %v1081 = vsel %vm1070, %v361, 0
        %v1084 = vsel %vm1070, %v362, 0
        %v1087 = vsel %vm1070, %v363, 0
        %v1090 = vsel %vm1070, %v364, 0
        %v1093 = vsel %vm1070, %v365, 0
        %v1096 = vsel %vm1070, %v366, 0
        %v1099 = vsel %vm1070, %v367, 0
        %v1102 = vsel %vm1070, %v368, 0
        %v1105 = vsel %vm1070, %v369, 0
        %v1108 = vsel %vm1070, %v370, 0
        %v1111 = vsel %vm1070, %v371, 0
        %v1114 = vsel %vm1070, %v372, 0
        %v1117 = vsel %vm1070, %v373, 0
        %v1120 = vsel %vm1070, %v374, 0
        %v1123 = vsel %vm1070, %v375, 0
        %v1126 = vsel %vm1070, %v376, 0
        %v1129 = vsel %vm1070, %v377, 0
        %v1132 = vsel %vm1070, %v378, 0
        %v1135 = vsel %vm1070, %v379, 0
        %v1138 = vsel %vm1070, %v380, 0
        %v1141 = vsel %vm1070, %v381, 0
        %v1144 = vsel %vm1070, %v382, 0
        %v1147 = vsel %vm1070, %v383, 0
        %v1150 = vsel %vm1070, %v384, 0
        %v1153 = vsel %vm1070, %v385, 0
        %v1156 = vsel %vm1070, %v386, 0
        %v1159 = vsel %vm1070, %v387, 0
        %v1162 = vsel %vm1070, %v388, 0
        %v1165 = vsel %vm1070, %v389, 0
        %v1168 = vsel %vm1070, %v390, 0
        %v1171 = vsel %vm1070, %v391, 0
        %v1174 = vsel %vm1070, %v392, 0
        %v1177 = vsel %vm1070, %v393, 0
        %v1180 = vsel %vm1070, %v394, 0
        %v1183 = vsel %vm1070, %v395, 0
        %v1186 = vsel %vm1070, %v396, 0
        %v1189 = vsel %vm1070, %v397, 0
        %v1192 = vsel %vm1070, %v398, 0
        %v1195 = vsel %vm1070, %v399, 0
        %v1198 = vsel %vm1070, %v400, 0
        %v1201 = vsel %vm1070, %v401, 0
        %v1204 = vsel %vm1070, %v402, 0
        %v1207 = vsel %vm1070, %v403, 0
        %v1210 = vsel %vm1070, %v404, 0
        %v1213 = vsel %vm1070, %v405, 0
        %v1216 = vsel %vm1070, %v406, 0
        %v1219 = vsel %vm1070, %v407, 0
        %v1222 = vsel %vm1070, %v408, 0
        %v1225 = vsel %vm1070, %v409, 0
        %v1228 = vsel %vm1070, %v410, 0
        %v1231 = vsel %vm1070, %v411, 0
        %v1234 = vsel %vm1070, %v412, 0
        %v1237 = vsel %vm1070, %v413, 0
        %v1240 = vsel %vm1070, %v414, 0
        %v1243 = vsel %vm1070, %v415, 0
        %v1246 = vsel %vm1070, %v416, 0
        %v1249 = vsel %vm1070, %v417, 0
        %v1252 = vsel %vm1070, %v418, 0
        %v1255 = vsel %vm1070, %v419, 0
        %v1258 = vsel %vm1070, %v420, 0
        %v1261 = vsel %vm1070, %v421, 0
        %vm1263 = vcmask 1045504
        %v1265 = vsel %vm1263, %v422, 0
        %1267 = vmatprep.subr.mxu0 0.0
        %1268 = vmatpush1.msra.mxu0 %v1265
        %1269 = vmatprep.subr.mxu0 0.0
        %1270 = vmatpush1.msra.mxu0 0.0
        %1271 = vmatprep.subr.mxu0 0.0
        %1272 = vmatpush1.msra.mxu0 0.0
        %1273 = vmatprep.subr.mxu0 0.0
        %1274 = vmatpush1.msra.mxu0 0.0
        %1275 = vmatprep.subr.mxu0 0.0
        %1276 = vmatpush1.msra.mxu0 0.0
        %1277 = vmatprep.subr.mxu0 0.0
        %1278 = vmatpush1.msra.mxu0 0.0
        %1279 = vmatprep.subr.mxu0 0.0
        %1280 = vmatpush1.msra.mxu0 0.0
        %1281 = vmatprep.subr.mxu0 0.0
        %1282 = vmatpush1.msra.mxu0 0.0
        %1283 = vmatprep.subr.mxu0 0.0
        %1284 = vmatpush1.msra.mxu0 0.0
        %1285 = vmatprep.subr.mxu0 0.0
        %1286 = vmatpush1.msra.mxu0 0.0
        %1287 = vmatprep.subr.mxu0 0.0
        %1288 = vmatpush1.msra.mxu0 0.0
        %1289 = vmatprep.subr.mxu0 0.0
        %1290 = vmatpush1.msra.mxu0 0.0
        %1291 = vmatprep.subr.mxu0 0.0
        %1292 = vmatpush1.msra.mxu0 0.0
        %1293 = vmatprep.subr.mxu0 0.0
        %1294 = vmatpush1.msra.mxu0 0.0
        %1295 = vmatprep.subr.mxu0 0.0
        %1296 = vmatpush1.msra.mxu0 0.0
        %1297 = vmatprep.subr.mxu0 0.0
        %1298 = vmatpush1.msra.mxu0 0.0
        %1299 = vmatprep.subr.mxu0 0.0
        %1300 = vmatpush1.msra.mxu0 0.0
        %1301 = vmatprep.subr.mxu0 0.0
        %1302 = vmatpush1.msra.mxu0 0.0
        %1303 = vmatprep.subr.mxu0 0.0
        %1304 = vmatpush1.msra.mxu0 0.0
        %1305 = vmatprep.subr.mxu0 0.0
        %1306 = vmatpush1.msra.mxu0 0.0
        %1307 = vmatprep.subr.mxu0 0.0
        %1308 = vmatpush1.msra.mxu0 0.0
        %1309 = vmatprep.subr.mxu0 0.0
        %1310 = vmatpush1.msra.mxu0 0.0
        %1311 = vmatprep.subr.mxu0 0.0
        %1312 = vmatpush1.msra.mxu0 0.0
        %1313 = vmatprep.subr.mxu0 0.0
        %1314 = vmatpush1.msra.mxu0 0.0
        %1315 = vmatprep.subr.mxu0 0.0
        %1316 = vmatpush1.msra.mxu0 0.0
        %1317 = vmatprep.subr.mxu0 0.0
        %1318 = vmatpush1.msra.mxu0 0.0
        %1319 = vmatprep.subr.mxu0 0.0
        %1320 = vmatpush1.msra.mxu0 0.0
        %1321 = vmatprep.subr.mxu0 0.0
        %1322 = vmatpush1.msra.mxu0 0.0
        %1323 = vmatprep.subr.mxu0 0.0
        %1324 = vmatpush1.msra.mxu0 0.0
        %1325 = vmatprep.subr.mxu0 0.0
        %1326 = vmatpush1.msra.mxu0 0.0
        %1327 = vmatprep.subr.mxu0 0.0
        %1328 = vmatpush1.msra.mxu0 0.0
        %1329 = vmatprep.subr.mxu0 0.0
        %1330 = vmatpush1.msra.mxu0 0.0
        %1331 = vmatprep.mubr.f32.mxu0 0.0
        %1332 = vmatmul.mubr.f32.gmra.mrb[0].mxu0 %v1072
        %v1333 = vpop.f32.mrb[0].mxu0
        %v1334 = vadd.f32 %v752, %v1333
        %v1335 = vpop.f32.mrb[0].mxu0
        %1336 = vmatprep.mubr.f32.mxu0 0.0
        %1337 = vmatmul.mubr.f32.gmra.mrb[0].mxu0 %v1075
        %v1338 = vpop.f32.mrb[0].mxu0
        %v1339 = vadd.f32 %v757, %v1338
        %v1340 = vpop.f32.mrb[0].mxu0
        %1341 = vmatprep.mubr.f32.mxu0 0.0
        %1342 = vmatmul.mubr.f32.gmra.mrb[0].mxu0 %v1078
        %v1343 = vpop.f32.mrb[0].mxu0
        %v1344 = vadd.f32 %v762, %v1343
        %v1345 = vpop.f32.mrb[0].mxu0
        %1346 = vmatprep.mubr.f32.mxu0 0.0
        %1347 = vmatmul.mubr.f32.gmra.mrb[0].mxu0 %v1081
        %v1348 = vpop.f32.mrb[0].mxu0
        %v1349 = vadd.f32 %v767, %v1348
        %v1350 = vpop.f32.mrb[0].mxu0
        %1351 = vmatprep.mubr.f32.mxu0 0.0
        %1352 = vmatmul.mubr.f32.gmra.mrb[0].mxu0 %v1084
        %v1353 = vpop.f32.mrb[0].mxu0
        %v1354 = vadd.f32 %v772, %v1353
        %v1355 = vpop.f32.mrb[0].mxu0
        %1356 = vmatprep.mubr.f32.mxu0 0.0
        %1357 = vmatmul.mubr.f32.gmra.mrb[0].mxu0 %v1087
        %v1358 = vpop.f32.mrb[0].mxu0
        %v1359 = vadd.f32 %v777, %v1358
        %v1360 = vpop.f32.mrb[0].mxu0
        %1361 = vmatprep.mubr.f32.mxu0 0.0
        %1362 = vmatmul.mubr.f32.gmra.mrb[0].mxu0 %v1090
        %v1363 = vpop.f32.mrb[0].mxu0
        %v1364 = vadd.f32 %v782, %v1363
        %v1365 = vpop.f32.mrb[0].mxu0
        %1366 = vmatprep.mubr.f32.mxu0 0.0
        %1367 = vmatmul.mubr.f32.gmra.mrb[0].mxu0 %v1093
        %v1368 = vpop.f32.mrb[0].mxu0
        %v1369 = vadd.f32 %v787, %v1368
        %v1370 = vpop.f32.mrb[0].mxu0
        %1371 = vmatprep.mubr.f32.mxu0 0.0
        %1372 = vmatmul.mubr.f32.gmra.mrb[0].mxu0 %v1096
        %v1373 = vpop.f32.mrb[0].mxu0
        %v1374 = vadd.f32 %v792, %v1373
        %v1375 = vpop.f32.mrb[0].mxu0
        %1376 = vmatprep.mubr.f32.mxu0 0.0
        %1377 = vmatmul.mubr.f32.gmra.mrb[0].mxu0 %v1099
        %v1378 = vpop.f32.mrb[0].mxu0
        %v1379 = vadd.f32 %v797, %v1378
        %v1380 = vpop.f32.mrb[0].mxu0
        %1381 = vmatprep.mubr.f32.mxu0 0.0
        %1382 = vmatmul.mubr.f32.gmra.mrb[0].mxu0 %v1102
        %v1383 = vpop.f32.mrb[0].mxu0
        %v1384 = vadd.f32 %v802, %v1383
        %v1385 = vpop.f32.mrb[0].mxu0
        %1386 = vmatprep.mubr.f32.mxu0 0.0
        %1387 = vmatmul.mubr.f32.gmra.mrb[0].mxu0 %v1105
        %v1388 = vpop.f32.mrb[0].mxu0
        %v1389 = vadd.f32 %v807, %v1388
        %v1390 = vpop.f32.mrb[0].mxu0
        %1391 = vmatprep.mubr.f32.mxu0 0.0
        %1392 = vmatmul.mubr.f32.gmra.mrb[0].mxu0 %v1108
        %v1393 = vpop.f32.mrb[0].mxu0
        %v1394 = vadd.f32 %v812, %v1393
        %v1395 = vpop.f32.mrb[0].mxu0
        %1396 = vmatprep.mubr.f32.mxu0 0.0
        %1397 = vmatmul.mubr.f32.gmra.mrb[0].mxu0 %v1111
        %v1398 = vpop.f32.mrb[0].mxu0
        %v1399 = vadd.f32 %v817, %v1398
        %v1400 = vpop.f32.mrb[0].mxu0
        %1401 = vmatprep.mubr.f32.mxu0 0.0
        %1402 = vmatmul.mubr.f32.gmra.mrb[0].mxu0 %v1114
        %v1403 = vpop.f32.mrb[0].mxu0
        %v1404 = vadd.f32 %v822, %v1403
        %v1405 = vpop.f32.mrb[0].mxu0
        %1406 = vmatprep.mubr.f32.mxu0 0.0
        %1407 = vmatmul.mubr.f32.gmra.mrb[0].mxu0 %v1117
        %v1408 = vpop.f32.mrb[0].mxu0
        %v1409 = vadd.f32 %v827, %v1408
        %v1410 = vpop.f32.mrb[0].mxu0
        %1411 = vmatprep.mubr.f32.mxu0 0.0
        %1412 = vmatmul.mubr.f32.gmra.mrb[0].mxu0 %v1120
        %v1413 = vpop.f32.mrb[0].mxu0
        %v1414 = vadd.f32 %v832, %v1413
        %v1415 = vpop.f32.mrb[0].mxu0
        %1416 = vmatprep.mubr.f32.mxu0 0.0
        %1417 = vmatmul.mubr.f32.gmra.mrb[0].mxu0 %v1123
        %v1418 = vpop.f32.mrb[0].mxu0
        %v1419 = vadd.f32 %v837, %v1418
        %v1420 = vpop.f32.mrb[0].mxu0
        %1421 = vmatprep.mubr.f32.mxu0 0.0
        %1422 = vmatmul.mubr.f32.gmra.mrb[0].mxu0 %v1126
        %v1423 = vpop.f32.mrb[0].mxu0
        %v1424 = vadd.f32 %v842, %v1423
        %v1425 = vpop.f32.mrb[0].mxu0
        %1426 = vmatprep.mubr.f32.mxu0 0.0
        %1427 = vmatmul.mubr.f32.gmra.mrb[0].mxu0 %v1129
        %v1428 = vpop.f32.mrb[0].mxu0
        %v1429 = vadd.f32 %v847, %v1428
        %v1430 = vpop.f32.mrb[0].mxu0
        %1431 = vmatprep.mubr.f32.mxu0 0.0
        %1432 = vmatmul.mubr.f32.gmra.mrb[0].mxu0 %v1132
        %v1433 = vpop.f32.mrb[0].mxu0
        %v1434 = vadd.f32 %v852, %v1433
        %v1435 = vpop.f32.mrb[0].mxu0
        %1436 = vmatprep.mubr.f32.mxu0 0.0
        %1437 = vmatmul.mubr.f32.gmra.mrb[0].mxu0 %v1135
        %v1438 = vpop.f32.mrb[0].mxu0
        %v1439 = vadd.f32 %v857, %v1438
        %v1440 = vpop.f32.mrb[0].mxu0
        %1441 = vmatprep.mubr.f32.mxu0 0.0
        %1442 = vmatmul.mubr.f32.gmra.mrb[0].mxu0 %v1138
        %v1443 = vpop.f32.mrb[0].mxu0
        %v1444 = vadd.f32 %v862, %v1443
        %v1445 = vpop.f32.mrb[0].mxu0
        %1446 = vmatprep.mubr.f32.mxu0 0.0
        %1447 = vmatmul.mubr.f32.gmra.mrb[0].mxu0 %v1141
        %v1448 = vpop.f32.mrb[0].mxu0
        %v1449 = vadd.f32 %v867, %v1448
        %v1450 = vpop.f32.mrb[0].mxu0
        %1451 = vmatprep.mubr.f32.mxu0 0.0
        %1452 = vmatmul.mubr.f32.gmra.mrb[0].mxu0 %v1144
        %v1453 = vpop.f32.mrb[0].mxu0
        %v1454 = vadd.f32 %v872, %v1453
        %v1455 = vpop.f32.mrb[0].mxu0
        %1456 = vmatprep.mubr.f32.mxu0 0.0
        %1457 = vmatmul.mubr.f32.gmra.mrb[0].mxu0 %v1147
        %v1458 = vpop.f32.mrb[0].mxu0
        %v1459 = vadd.f32 %v877, %v1458
        %v1460 = vpop.f32.mrb[0].mxu0
        %1461 = vmatprep.mubr.f32.mxu0 0.0
        %1462 = vmatmul.mubr.f32.gmra.mrb[0].mxu0 %v1150
        %v1463 = vpop.f32.mrb[0].mxu0
        %v1464 = vadd.f32 %v882, %v1463
        %v1465 = vpop.f32.mrb[0].mxu0
        %1466 = vmatprep.mubr.f32.mxu0 0.0
        %1467 = vmatmul.mubr.f32.gmra.mrb[0].mxu0 %v1153
        %v1468 = vpop.f32.mrb[0].mxu0
        %v1469 = vadd.f32 %v887, %v1468
        %v1470 = vpop.f32.mrb[0].mxu0
        %1471 = vmatprep.mubr.f32.mxu0 0.0
        %1472 = vmatmul.mubr.f32.gmra.mrb[0].mxu0 %v1156
        %v1473 = vpop.f32.mrb[0].mxu0
        %v1474 = vadd.f32 %v892, %v1473
        %v1475 = vpop.f32.mrb[0].mxu0
        %1476 = vmatprep.mubr.f32.mxu0 0.0
        %1477 = vmatmul.mubr.f32.gmra.mrb[0].mxu0 %v1159
        %v1478 = vpop.f32.mrb[0].mxu0
        %v1479 = vadd.f32 %v897, %v1478
        %v1480 = vpop.f32.mrb[0].mxu0
        %1481 = vmatprep.mubr.f32.mxu0 0.0
        %1482 = vmatmul.mubr.f32.gmra.mrb[0].mxu0 %v1162
        %v1483 = vpop.f32.mrb[0].mxu0
        %v1484 = vadd.f32 %v902, %v1483
        %v1485 = vpop.f32.mrb[0].mxu0
        %1486 = vmatprep.mubr.f32.mxu0 0.0
        %1487 = vmatmul.mubr.f32.gmra.mrb[0].mxu0 %v1165
        %v1488 = vpop.f32.mrb[0].mxu0
        %v1489 = vadd.f32 %v907, %v1488
        %v1490 = vpop.f32.mrb[0].mxu0
        %1491 = vmatprep.mubr.f32.mxu0 0.0
        %1492 = vmatmul.mubr.f32.gmra.mrb[0].mxu0 %v1168
        %v1493 = vpop.f32.mrb[0].mxu0
        %v1494 = vadd.f32 %v912, %v1493
        %v1495 = vpop.f32.mrb[0].mxu0
        %1496 = vmatprep.mubr.f32.mxu0 0.0
        %1497 = vmatmul.mubr.f32.gmra.mrb[0].mxu0 %v1171
        %v1498 = vpop.f32.mrb[0].mxu0
        %v1499 = vadd.f32 %v917, %v1498
        %v1500 = vpop.f32.mrb[0].mxu0
        %1501 = vmatprep.mubr.f32.mxu0 0.0
        %1502 = vmatmul.mubr.f32.gmra.mrb[0].mxu0 %v1174
        %v1503 = vpop.f32.mrb[0].mxu0
        %v1504 = vadd.f32 %v922, %v1503
        %v1505 = vpop.f32.mrb[0].mxu0
        %1506 = vmatprep.mubr.f32.mxu0 0.0
        %1507 = vmatmul.mubr.f32.gmra.mrb[0].mxu0 %v1177
        %v1508 = vpop.f32.mrb[0].mxu0
        %v1509 = vadd.f32 %v927, %v1508
        %v1510 = vpop.f32.mrb[0].mxu0
        %1511 = vmatprep.mubr.f32.mxu0 0.0
        %1512 = vmatmul.mubr.f32.gmra.mrb[0].mxu0 %v1180
        %v1513 = vpop.f32.mrb[0].mxu0
        %v1514 = vadd.f32 %v932, %v1513
        %v1515 = vpop.f32.mrb[0].mxu0
        %1516 = vmatprep.mubr.f32.mxu0 0.0
        %1517 = vmatmul.mubr.f32.gmra.mrb[0].mxu0 %v1183
        %v1518 = vpop.f32.mrb[0].mxu0
        %v1519 = vadd.f32 %v937, %v1518
        %v1520 = vpop.f32.mrb[0].mxu0
        %1521 = vmatprep.mubr.f32.mxu0 0.0
        %1522 = vmatmul.mubr.f32.gmra.mrb[0].mxu0 %v1186
        %v1523 = vpop.f32.mrb[0].mxu0
        %v1524 = vadd.f32 %v942, %v1523
        %v1525 = vpop.f32.mrb[0].mxu0
        %1526 = vmatprep.mubr.f32.mxu0 0.0
        %1527 = vmatmul.mubr.f32.gmra.mrb[0].mxu0 %v1189
        %v1528 = vpop.f32.mrb[0].mxu0
        %v1529 = vadd.f32 %v947, %v1528
        %v1530 = vpop.f32.mrb[0].mxu0
        %1531 = vmatprep.mubr.f32.mxu0 0.0
        %1532 = vmatmul.mubr.f32.gmra.mrb[0].mxu0 %v1192
        %v1533 = vpop.f32.mrb[0].mxu0
        %v1534 = vadd.f32 %v952, %v1533
        %v1535 = vpop.f32.mrb[0].mxu0
        %1536 = vmatprep.mubr.f32.mxu0 0.0
        %1537 = vmatmul.mubr.f32.gmra.mrb[0].mxu0 %v1195
        %v1538 = vpop.f32.mrb[0].mxu0
        %v1539 = vadd.f32 %v957, %v1538
        %v1540 = vpop.f32.mrb[0].mxu0
        %1541 = vmatprep.mubr.f32.mxu0 0.0
        %1542 = vmatmul.mubr.f32.gmra.mrb[0].mxu0 %v1198
        %v1543 = vpop.f32.mrb[0].mxu0
        %v1544 = vadd.f32 %v962, %v1543
        %v1545 = vpop.f32.mrb[0].mxu0
        %1546 = vmatprep.mubr.f32.mxu0 0.0
        %1547 = vmatmul.mubr.f32.gmra.mrb[0].mxu0 %v1201
        %v1548 = vpop.f32.mrb[0].mxu0
        %v1549 = vadd.f32 %v967, %v1548
        %v1550 = vpop.f32.mrb[0].mxu0
        %1551 = vmatprep.mubr.f32.mxu0 0.0
        %1552 = vmatmul.mubr.f32.gmra.mrb[0].mxu0 %v1204
        %v1553 = vpop.f32.mrb[0].mxu0
        %v1554 = vadd.f32 %v972, %v1553
        %v1555 = vpop.f32.mrb[0].mxu0
        %1556 = vmatprep.mubr.f32.mxu0 0.0
        %1557 = vmatmul.mubr.f32.gmra.mrb[0].mxu0 %v1207
        %v1558 = vpop.f32.mrb[0].mxu0
        %v1559 = vadd.f32 %v977, %v1558
        %v1560 = vpop.f32.mrb[0].mxu0
        %1561 = vmatprep.mubr.f32.mxu0 0.0
        %1562 = vmatmul.mubr.f32.gmra.mrb[0].mxu0 %v1210
        %v1563 = vpop.f32.mrb[0].mxu0
        %v1564 = vadd.f32 %v982, %v1563
        %v1565 = vpop.f32.mrb[0].mxu0
        %1566 = vmatprep.mubr.f32.mxu0 0.0
        %1567 = vmatmul.mubr.f32.gmra.mrb[0].mxu0 %v1213
        %v1568 = vpop.f32.mrb[0].mxu0
        %v1569 = vadd.f32 %v987, %v1568
        %v1570 = vpop.f32.mrb[0].mxu0
        %1571 = vmatprep.mubr.f32.mxu0 0.0
        %1572 = vmatmul.mubr.f32.gmra.mrb[0].mxu0 %v1216
        %v1573 = vpop.f32.mrb[0].mxu0
        %v1574 = vadd.f32 %v992, %v1573
        %v1575 = vpop.f32.mrb[0].mxu0
        %1576 = vmatprep.mubr.f32.mxu0 0.0
        %1577 = vmatmul.mubr.f32.gmra.mrb[0].mxu0 %v1219
        %v1578 = vpop.f32.mrb[0].mxu0
        %v1579 = vadd.f32 %v997, %v1578
        %v1580 = vpop.f32.mrb[0].mxu0
        %1581 = vmatprep.mubr.f32.mxu0 0.0
        %1582 = vmatmul.mubr.f32.gmra.mrb[0].mxu0 %v1222
        %v1583 = vpop.f32.mrb[0].mxu0
        %v1584 = vadd.f32 %v1002, %v1583
        %v1585 = vpop.f32.mrb[0].mxu0
        %1586 = vmatprep.mubr.f32.mxu0 0.0
        %1587 = vmatmul.mubr.f32.gmra.mrb[0].mxu0 %v1225
        %v1588 = vpop.f32.mrb[0].mxu0
        %v1589 = vadd.f32 %v1007, %v1588
        %v1590 = vpop.f32.mrb[0].mxu0
        %1591 = vmatprep.mubr.f32.mxu0 0.0
        %1592 = vmatmul.mubr.f32.gmra.mrb[0].mxu0 %v1228
        %v1593 = vpop.f32.mrb[0].mxu0
        %v1594 = vadd.f32 %v1012, %v1593
        %v1595 = vpop.f32.mrb[0].mxu0
        %1596 = vmatprep.mubr.f32.mxu0 0.0
        %1597 = vmatmul.mubr.f32.gmra.mrb[0].mxu0 %v1231
        %v1598 = vpop.f32.mrb[0].mxu0
        %v1599 = vadd.f32 %v1017, %v1598
        %v1600 = vpop.f32.mrb[0].mxu0
        %1601 = vmatprep.mubr.f32.mxu0 0.0
        %1602 = vmatmul.mubr.f32.gmra.mrb[0].mxu0 %v1234
        %v1603 = vpop.f32.mrb[0].mxu0
        %v1604 = vadd.f32 %v1022, %v1603
        %v1605 = vpop.f32.mrb[0].mxu0
        %1606 = vmatprep.mubr.f32.mxu0 0.0
        %1607 = vmatmul.mubr.f32.gmra.mrb[0].mxu0 %v1237
        %v1608 = vpop.f32.mrb[0].mxu0
        %v1609 = vadd.f32 %v1027, %v1608
        %v1610 = vpop.f32.mrb[0].mxu0
        %1611 = vmatprep.mubr.f32.mxu0 0.0
        %1612 = vmatmul.mubr.f32.gmra.mrb[0].mxu0 %v1240
        %v1613 = vpop.f32.mrb[0].mxu0
        %v1614 = vadd.f32 %v1032, %v1613
        %v1615 = vpop.f32.mrb[0].mxu0
        %1616 = vmatprep.mubr.f32.mxu0 0.0
        %1617 = vmatmul.mubr.f32.gmra.mrb[0].mxu0 %v1243
        %v1618 = vpop.f32.mrb[0].mxu0
        %v1619 = vadd.f32 %v1037, %v1618
        %v1620 = vpop.f32.mrb[0].mxu0
        %1621 = vmatprep.mubr.f32.mxu0 0.0
        %1622 = vmatmul.mubr.f32.gmra.mrb[0].mxu0 %v1246
        %v1623 = vpop.f32.mrb[0].mxu0
        %v1624 = vadd.f32 %v1042, %v1623
        %v1625 = vpop.f32.mrb[0].mxu0
        %1626 = vmatprep.mubr.f32.mxu0 0.0
        %1627 = vmatmul.mubr.f32.gmra.mrb[0].mxu0 %v1249
        %v1628 = vpop.f32.mrb[0].mxu0
        %v1629 = vadd.f32 %v1047, %v1628
        %v1630 = vpop.f32.mrb[0].mxu0
        %1631 = vmatprep.mubr.f32.mxu0 0.0
        %1632 = vmatmul.mubr.f32.gmra.mrb[0].mxu0 %v1252
        %v1633 = vpop.f32.mrb[0].mxu0
        %v1634 = vadd.f32 %v1052, %v1633
        %v1635 = vpop.f32.mrb[0].mxu0
        %1636 = vmatprep.mubr.f32.mxu0 0.0
        %1637 = vmatmul.mubr.f32.gmra.mrb[0].mxu0 %v1255
        %v1638 = vpop.f32.mrb[0].mxu0
        %v1639 = vadd.f32 %v1057, %v1638
        %v1640 = vpop.f32.mrb[0].mxu0
        %1641 = vmatprep.mubr.f32.mxu0 0.0
        %1642 = vmatmul.mubr.f32.gmra.mrb[0].mxu0 %v1258
        %v1643 = vpop.f32.mrb[0].mxu0
        %v1644 = vadd.f32 %v1062, %v1643
        %v1645 = vpop.f32.mrb[0].mxu0
        %1646 = vmatprep.mubr.f32.mxu0 0.0
        %1647 = vmatmul.mubr.f32.gmra.mrb[0].mxu0 %v1261
        %v1648 = vpop.f32.mrb[0].mxu0
        %v1649 = vadd.f32 %v1067, %v1648
        %v1650 = vpop.f32.mrb[0].mxu0
        %1651 = vdwg.mxu0
        %v1652 = vld [vmem:[%s4] sm:$0x1]
        %v1654 = vlaneseq
        %v1655 = vshrl.u32 %v1654, 7
        %v1656 = vsub.s32 0, %v1655
        %v1657 = vrot.slane %v1652, %v1656
        %v1659 = vadd.f32 %v1334, %v1657
        %v1660 = vadd.f32 %v1339, %v1657
        %v1661 = vadd.f32 %v1344, %v1657
        %v1662 = vadd.f32 %v1349, %v1657
        %v1663 = vadd.f32 %v1354, %v1657
        %v1664 = vadd.f32 %v1359, %v1657
        %v1665 = vadd.f32 %v1364, %v1657
        %v1666 = vadd.f32 %v1369, %v1657
        %v1667 = vadd.f32 %v1374, %v1657
        %v1668 = vadd.f32 %v1379, %v1657
        %v1669 = vadd.f32 %v1384, %v1657
        %v1670 = vadd.f32 %v1389, %v1657
        %v1671 = vadd.f32 %v1394, %v1657
        %v1672 = vadd.f32 %v1399, %v1657
        %v1673 = vadd.f32 %v1404, %v1657
        %v1674 = vadd.f32 %v1409, %v1657
        %v1675 = vadd.f32 %v1414, %v1657
        %v1676 = vadd.f32 %v1419, %v1657
        %v1677 = vadd.f32 %v1424, %v1657
        %v1678 = vadd.f32 %v1429, %v1657
        %v1679 = vadd.f32 %v1434, %v1657
        %v1680 = vadd.f32 %v1439, %v1657
        %v1681 = vadd.f32 %v1444, %v1657
        %v1682 = vadd.f32 %v1449, %v1657
        %v1683 = vadd.f32 %v1454, %v1657
        %v1684 = vadd.f32 %v1459, %v1657
        %v1685 = vadd.f32 %v1464, %v1657
        %v1686 = vadd.f32 %v1469, %v1657
        %v1687 = vadd.f32 %v1474, %v1657
        %v1688 = vadd.f32 %v1479, %v1657
        %v1689 = vadd.f32 %v1484, %v1657
        %v1690 = vadd.f32 %v1489, %v1657
        %v1691 = vadd.f32 %v1494, %v1657
        %v1692 = vadd.f32 %v1499, %v1657
        %v1693 = vadd.f32 %v1504, %v1657
        %v1694 = vadd.f32 %v1509, %v1657
        %v1695 = vadd.f32 %v1514, %v1657
        %v1696 = vadd.f32 %v1519, %v1657
        %v1697 = vadd.f32 %v1524, %v1657
        %v1698 = vadd.f32 %v1529, %v1657
        %v1699 = vadd.f32 %v1534, %v1657
        %v1700 = vadd.f32 %v1539, %v1657
        %v1701 = vadd.f32 %v1544, %v1657
        %v1702 = vadd.f32 %v1549, %v1657
        %v1703 = vadd.f32 %v1554, %v1657
        %v1704 = vadd.f32 %v1559, %v1657
        %v1705 = vadd.f32 %v1564, %v1657
        %v1706 = vadd.f32 %v1569, %v1657
        %v1707 = vadd.f32 %v1574, %v1657
        %v1708 = vadd.f32 %v1579, %v1657
        %v1709 = vadd.f32 %v1584, %v1657
        %v1710 = vadd.f32 %v1589, %v1657
        %v1711 = vadd.f32 %v1594, %v1657
        %v1712 = vadd.f32 %v1599, %v1657
        %v1713 = vadd.f32 %v1604, %v1657
        %v1714 = vadd.f32 %v1609, %v1657
        %v1715 = vadd.f32 %v1614, %v1657
        %v1716 = vadd.f32 %v1619, %v1657
        %v1717 = vadd.f32 %v1624, %v1657
        %v1718 = vadd.f32 %v1629, %v1657
        %v1719 = vadd.f32 %v1634, %v1657
        %v1720 = vadd.f32 %v1639, %v1657
        %v1721 = vadd.f32 %v1644, %v1657
        %v1722 = vadd.f32 %v1649, %v1657
        %v1723 = vtanh.pop %v1659
        %v1724 = vtanh.pop %v1660
        %v1725 = vtanh.pop %v1661
        %v1726 = vtanh.pop %v1662
        %v1727 = vtanh.pop %v1663
        %v1728 = vtanh.pop %v1664
        %v1729 = vtanh.pop %v1665
        %v1730 = vtanh.pop %v1666
        %v1731 = vtanh.pop %v1667
        %v1732 = vtanh.pop %v1668
        %v1733 = vtanh.pop %v1669
        %v1734 = vtanh.pop %v1670
        %v1735 = vtanh.pop %v1671
        %v1736 = vtanh.pop %v1672
        %v1737 = vtanh.pop %v1673
        %v1738 = vtanh.pop %v1674
        %v1739 = vtanh.pop %v1675
        %v1740 = vtanh.pop %v1676
        %v1741 = vtanh.pop %v1677
        %v1742 = vtanh.pop %v1678
        %v1743 = vtanh.pop %v1679
        %v1744 = vtanh.pop %v1680
        %v1745 = vtanh.pop %v1681
        %v1746 = vtanh.pop %v1682
        %v1747 = vtanh.pop %v1683
        %v1748 = vtanh.pop %v1684
        %v1749 = vtanh.pop %v1685
        %v1750 = vtanh.pop %v1686
        %v1751 = vtanh.pop %v1687
        %v1752 = vtanh.pop %v1688
        %v1753 = vtanh.pop %v1689
        %v1754 = vtanh.pop %v1690
        %v1755 = vtanh.pop %v1691
        %v1756 = vtanh.pop %v1692
        %v1757 = vtanh.pop %v1693
        %v1758 = vtanh.pop %v1694
        %v1759 = vtanh.pop %v1695
        %v1760 = vtanh.pop %v1696
        %v1761 = vtanh.pop %v1697
        %v1762 = vtanh.pop %v1698
        %v1763 = vtanh.pop %v1699
        %v1764 = vtanh.pop %v1700
        %v1765 = vtanh.pop %v1701
        %v1766 = vtanh.pop %v1702
        %v1767 = vtanh.pop %v1703
        %v1768 = vtanh.pop %v1704
        %v1769 = vtanh.pop %v1705
        %v1770 = vtanh.pop %v1706
        %v1771 = vtanh.pop %v1707
        %v1772 = vtanh.pop %v1708
        %v1773 = vtanh.pop %v1709
        %v1774 = vtanh.pop %v1710
        %v1775 = vtanh.pop %v1711
        %v1776 = vtanh.pop %v1712
        %v1777 = vtanh.pop %v1713
        %v1778 = vtanh.pop %v1714
        %v1779 = vtanh.pop %v1715
        %v1780 = vtanh.pop %v1716
        %v1781 = vtanh.pop %v1717
        %v1782 = vtanh.pop %v1718
        %v1783 = vtanh.pop %v1719
        %v1784 = vtanh.pop %v1720
        %v1785 = vtanh.pop %v1721
        %v1786 = vtanh.pop %v1722
        %v1787 = vld [vmem:[%s5] sm:$0xff]
        %v1788 = vld [vmem:[%s5 + $0x8] sm:$0xff]
        %v1789 = vld [vmem:[%s5 + $0x10] sm:$0xff]
        %v1790 = vld [vmem:[%s5 + $0x18] sm:$0xff]
        %v1791 = vld [vmem:[%s6] sm:$0x1]
        %v1793 = vlaneseq
        %v1794 = vshrl.u32 %v1793, 7
        %v1795 = vsub.s32 0, %v1794
        %v1796 = vrot.slane %v1791, %v1795
        %vm1798 = vcmask 261120
        %v1800 = vsel %vm1798, %v1723, 0
        %v1803 = vsel %vm1798, %v1724, 0
        %v1806 = vsel %vm1798, %v1725, 0
        %v1809 = vsel %vm1798, %v1726, 0
        %v1812 = vsel %vm1798, %v1727, 0
        %v1815 = vsel %vm1798, %v1728, 0
        %v1818 = vsel %vm1798, %v1729, 0
        %v1821 = vsel %vm1798, %v1730, 0
        %v1824 = vsel %vm1798, %v1731, 0
        %v1827 = vsel %vm1798, %v1732, 0
        %v1830 = vsel %vm1798, %v1733, 0
        %v1833 = vsel %vm1798, %v1734, 0
        %v1836 = vsel %vm1798, %v1735, 0
        %v1839 = vsel %vm1798, %v1736, 0
        %v1842 = vsel %vm1798, %v1737, 0
        %v1845 = vsel %vm1798, %v1738, 0
        %v1848 = vsel %vm1798, %v1739, 0
        %v1851 = vsel %vm1798, %v1740, 0
        %v1854 = vsel %vm1798, %v1741, 0
        %v1857 = vsel %vm1798, %v1742, 0
        %v1860 = vsel %vm1798, %v1743, 0
        %v1863 = vsel %vm1798, %v1744, 0
        %v1866 = vsel %vm1798, %v1745, 0
        %v1869 = vsel %vm1798, %v1746, 0
        %v1872 = vsel %vm1798, %v1747, 0
        %v1875 = vsel %vm1798, %v1748, 0
        %v1878 = vsel %vm1798, %v1749, 0
        %v1881 = vsel %vm1798, %v1750, 0
        %v1884 = vsel %vm1798, %v1751, 0
        %v1887 = vsel %vm1798, %v1752, 0
        %v1890 = vsel %vm1798, %v1753, 0
        %v1893 = vsel %vm1798, %v1754, 0
        %v1896 = vsel %vm1798, %v1755, 0
        %v1899 = vsel %vm1798, %v1756, 0
        %v1902 = vsel %vm1798, %v1757, 0
        %v1905 = vsel %vm1798, %v1758, 0
        %v1908 = vsel %vm1798, %v1759, 0
        %v1911 = vsel %vm1798, %v1760, 0
        %v1914 = vsel %vm1798, %v1761, 0
        %v1917 = vsel %vm1798, %v1762, 0
        %v1920 = vsel %vm1798, %v1763, 0
        %v1923 = vsel %vm1798, %v1764, 0
        %v1926 = vsel %vm1798, %v1765, 0
        %v1929 = vsel %vm1798, %v1766, 0
        %v1932 = vsel %vm1798, %v1767, 0
        %v1935 = vsel %vm1798, %v1768, 0
        %v1938 = vsel %vm1798, %v1769, 0
        %v1941 = vsel %vm1798, %v1770, 0
        %v1944 = vsel %vm1798, %v1771, 0
        %v1947 = vsel %vm1798, %v1772, 0
        %v1950 = vsel %vm1798, %v1773, 0
        %v1953 = vsel %vm1798, %v1774, 0
        %v1956 = vsel %vm1798, %v1775, 0
        %v1959 = vsel %vm1798, %v1776, 0
        %v1962 = vsel %vm1798, %v1777, 0
        %v1965 = vsel %vm1798, %v1778, 0
        %v1968 = vsel %vm1798, %v1779, 0
        %v1971 = vsel %vm1798, %v1780, 0
        %v1974 = vsel %vm1798, %v1781, 0
        %v1977 = vsel %vm1798, %v1782, 0
        %v1980 = vsel %vm1798, %v1783, 0
        %v1983 = vsel %vm1798, %v1784, 0
        %v1986 = vsel %vm1798, %v1785, 0
        %v1989 = vsel %vm1798, %v1786, 0
        %1991 = vmatprep.subr.mxu0 0.0
        %1992 = vmatpush1.msra.mxu0 %v1787
        %1993 = vmatprep.subr.mxu0 0.0
        %1994 = vmatpush1.msra.mxu0 %v1788
        %1995 = vmatprep.subr.mxu0 0.0
        %1996 = vmatpush1.msra.mxu0 %v1789
        %1997 = vmatprep.subr.mxu0 0.0
        %1998 = vmatpush1.msra.mxu0 %v1790
        %1999 = vmatprep.subr.mxu0 0.0
        %2000 = vmatpush1.msra.mxu0 0.0
        %2001 = vmatprep.subr.mxu0 0.0
        %2002 = vmatpush1.msra.mxu0 0.0
        %2003 = vmatprep.subr.mxu0 0.0
        %2004 = vmatpush1.msra.mxu0 0.0
        %2005 = vmatprep.subr.mxu0 0.0
        %2006 = vmatpush1.msra.mxu0 0.0
        %2007 = vmatprep.subr.mxu0 0.0
        %2008 = vmatpush1.msra.mxu0 0.0
        %2009 = vmatprep.subr.mxu0 0.0
        %2010 = vmatpush1.msra.mxu0 0.0
        %2011 = vmatprep.subr.mxu0 0.0
        %2012 = vmatpush1.msra.mxu0 0.0
        %2013 = vmatprep.subr.mxu0 0.0
        %2014 = vmatpush1.msra.mxu0 0.0
        %2015 = vmatprep.subr.mxu0 0.0
        %2016 = vmatpush1.msra.mxu0 0.0
        %2017 = vmatprep.subr.mxu0 0.0
        %2018 = vmatpush1.msra.mxu0 0.0
        %2019 = vmatprep.subr.mxu0 0.0
        %2020 = vmatpush1.msra.mxu0 0.0
        %2021 = vmatprep.subr.mxu0 0.0
        %2022 = vmatpush1.msra.mxu0 0.0
        %2023 = vmatprep.subr.mxu0 0.0
        %2024 = vmatpush1.msra.mxu0 0.0
        %2025 = vmatprep.subr.mxu0 0.0
        %2026 = vmatpush1.msra.mxu0 0.0
        %2027 = vmatprep.subr.mxu0 0.0
        %2028 = vmatpush1.msra.mxu0 0.0
        %2029 = vmatprep.subr.mxu0 0.0
        %2030 = vmatpush1.msra.mxu0 0.0
        %2031 = vmatprep.subr.mxu0 0.0
        %2032 = vmatpush1.msra.mxu0 0.0
        %2033 = vmatprep.subr.mxu0 0.0
        %2034 = vmatpush1.msra.mxu0 0.0
        %2035 = vmatprep.subr.mxu0 0.0
        %2036 = vmatpush1.msra.mxu0 0.0
        %2037 = vmatprep.subr.mxu0 0.0
        %2038 = vmatpush1.msra.mxu0 0.0
        %2039 = vmatprep.subr.mxu0 0.0
        %2040 = vmatpush1.msra.mxu0 0.0
        %2041 = vmatprep.subr.mxu0 0.0
        %2042 = vmatpush1.msra.mxu0 0.0
        %2043 = vmatprep.subr.mxu0 0.0
        %2044 = vmatpush1.msra.mxu0 0.0
        %2045 = vmatprep.subr.mxu0 0.0
        %2046 = vmatpush1.msra.mxu0 0.0
        %2047 = vmatprep.subr.mxu0 0.0
        %2048 = vmatpush1.msra.mxu0 0.0
        %2049 = vmatprep.subr.mxu0 0.0
        %2050 = vmatpush1.msra.mxu0 0.0
        %2051 = vmatprep.subr.mxu0 0.0
        %2052 = vmatpush1.msra.mxu0 0.0
        %2053 = vmatprep.subr.mxu0 0.0
        %2054 = vmatpush1.msra.mxu0 0.0
        %2055 = vmatprep.mubr.f32.mxu0 0.0
        %2056 = vmatmul.mubr.f32.gmra.mrb[0].mxu0 %v1800
        %v2057 = vpop.f32.mrb[0].mxu0
        %v2058 = vadd.f32 %v1796, %v2057
        %v2059 = vpop.f32.mrb[0].mxu0
        %2060 = vmatprep.mubr.f32.mxu0 0.0
        %2061 = vmatmul.mubr.f32.gmra.mrb[0].mxu0 %v1803
        %v2062 = vpop.f32.mrb[0].mxu0
        %v2063 = vadd.f32 %v1796, %v2062
        %v2064 = vpop.f32.mrb[0].mxu0
        %2065 = vmatprep.mubr.f32.mxu0 0.0
        %2066 = vmatmul.mubr.f32.gmra.mrb[0].mxu0 %v1806
        %v2067 = vpop.f32.mrb[0].mxu0
        %v2068 = vadd.f32 %v1796, %v2067
        %v2069 = vpop.f32.mrb[0].mxu0
        %2070 = vmatprep.mubr.f32.mxu0 0.0
        %2071 = vmatmul.mubr.f32.gmra.mrb[0].mxu0 %v1809
        %v2072 = vpop.f32.mrb[0].mxu0
        %v2073 = vadd.f32 %v1796, %v2072
        %v2074 = vpop.f32.mrb[0].mxu0
        %2075 = vmatprep.mubr.f32.mxu0 0.0
        %2076 = vmatmul.mubr.f32.gmra.mrb[0].mxu0 %v1812
        %v2077 = vpop.f32.mrb[0].mxu0
        %v2078 = vadd.f32 %v1796, %v2077
        %v2079 = vpop.f32.mrb[0].mxu0
        %2080 = vmatprep.mubr.f32.mxu0 0.0
        %2081 = vmatmul.mubr.f32.gmra.mrb[0].mxu0 %v1815
        %v2082 = vpop.f32.mrb[0].mxu0
        %v2083 = vadd.f32 %v1796, %v2082
        %v2084 = vpop.f32.mrb[0].mxu0
        %2085 = vmatprep.mubr.f32.mxu0 0.0
        %2086 = vmatmul.mubr.f32.gmra.mrb[0].mxu0 %v1818
        %v2087 = vpop.f32.mrb[0].mxu0
        %v2088 = vadd.f32 %v1796, %v2087
        %v2089 = vpop.f32.mrb[0].mxu0
        %2090 = vmatprep.mubr.f32.mxu0 0.0
        %2091 = vmatmul.mubr.f32.gmra.mrb[0].mxu0 %v1821
        %v2092 = vpop.f32.mrb[0].mxu0
        %v2093 = vadd.f32 %v1796, %v2092
        %v2094 = vpop.f32.mrb[0].mxu0
        %2095 = vmatprep.mubr.f32.mxu0 0.0
        %2096 = vmatmul.mubr.f32.gmra.mrb[0].mxu0 %v1824
        %v2097 = vpop.f32.mrb[0].mxu0
        %v2098 = vadd.f32 %v1796, %v2097
        %v2099 = vpop.f32.mrb[0].mxu0
        %2100 = vmatprep.mubr.f32.mxu0 0.0
        %2101 = vmatmul.mubr.f32.gmra.mrb[0].mxu0 %v1827
        %v2102 = vpop.f32.mrb[0].mxu0
        %v2103 = vadd.f32 %v1796, %v2102
        %v2104 = vpop.f32.mrb[0].mxu0
        %2105 = vmatprep.mubr.f32.mxu0 0.0
        %2106 = vmatmul.mubr.f32.gmra.mrb[0].mxu0 %v1830
        %v2107 = vpop.f32.mrb[0].mxu0
        %v2108 = vadd.f32 %v1796, %v2107
        %v2109 = vpop.f32.mrb[0].mxu0
        %2110 = vmatprep.mubr.f32.mxu0 0.0
        %2111 = vmatmul.mubr.f32.gmra.mrb[0].mxu0 %v1833
        %v2112 = vpop.f32.mrb[0].mxu0
        %v2113 = vadd.f32 %v1796, %v2112
        %v2114 = vpop.f32.mrb[0].mxu0
        %2115 = vmatprep.mubr.f32.mxu0 0.0
        %2116 = vmatmul.mubr.f32.gmra.mrb[0].mxu0 %v1836
        %v2117 = vpop.f32.mrb[0].mxu0
        %v2118 = vadd.f32 %v1796, %v2117
        %v2119 = vpop.f32.mrb[0].mxu0
        %2120 = vmatprep.mubr.f32.mxu0 0.0
        %2121 = vmatmul.mubr.f32.gmra.mrb[0].mxu0 %v1839
        %v2122 = vpop.f32.mrb[0].mxu0
        %v2123 = vadd.f32 %v1796, %v2122
        %v2124 = vpop.f32.mrb[0].mxu0
        %2125 = vmatprep.mubr.f32.mxu0 0.0
        %2126 = vmatmul.mubr.f32.gmra.mrb[0].mxu0 %v1842
        %v2127 = vpop.f32.mrb[0].mxu0
        %v2128 = vadd.f32 %v1796, %v2127
        %v2129 = vpop.f32.mrb[0].mxu0
        %2130 = vmatprep.mubr.f32.mxu0 0.0
        %2131 = vmatmul.mubr.f32.gmra.mrb[0].mxu0 %v1845
        %v2132 = vpop.f32.mrb[0].mxu0
        %v2133 = vadd.f32 %v1796, %v2132
        %v2134 = vpop.f32.mrb[0].mxu0
        %2135 = vmatprep.mubr.f32.mxu0 0.0
        %2136 = vmatmul.mubr.f32.gmra.mrb[0].mxu0 %v1848
        %v2137 = vpop.f32.mrb[0].mxu0
        %v2138 = vadd.f32 %v1796, %v2137
        %v2139 = vpop.f32.mrb[0].mxu0
        %2140 = vmatprep.mubr.f32.mxu0 0.0
        %2141 = vmatmul.mubr.f32.gmra.mrb[0].mxu0 %v1851
        %v2142 = vpop.f32.mrb[0].mxu0
        %v2143 = vadd.f32 %v1796, %v2142
        %v2144 = vpop.f32.mrb[0].mxu0
        %2145 = vmatprep.mubr.f32.mxu0 0.0
        %2146 = vmatmul.mubr.f32.gmra.mrb[0].mxu0 %v1854
        %v2147 = vpop.f32.mrb[0].mxu0
        %v2148 = vadd.f32 %v1796, %v2147
        %v2149 = vpop.f32.mrb[0].mxu0
        %2150 = vmatprep.mubr.f32.mxu0 0.0
        %2151 = vmatmul.mubr.f32.gmra.mrb[0].mxu0 %v1857
        %v2152 = vpop.f32.mrb[0].mxu0
        %v2153 = vadd.f32 %v1796, %v2152
        %v2154 = vpop.f32.mrb[0].mxu0
        %2155 = vmatprep.mubr.f32.mxu0 0.0
        %2156 = vmatmul.mubr.f32.gmra.mrb[0].mxu0 %v1860
        %v2157 = vpop.f32.mrb[0].mxu0
        %v2158 = vadd.f32 %v1796, %v2157
        %v2159 = vpop.f32.mrb[0].mxu0
        %2160 = vmatprep.mubr.f32.mxu0 0.0
        %2161 = vmatmul.mubr.f32.gmra.mrb[0].mxu0 %v1863
        %v2162 = vpop.f32.mrb[0].mxu0
        %v2163 = vadd.f32 %v1796, %v2162
        %v2164 = vpop.f32.mrb[0].mxu0
        %2165 = vmatprep.mubr.f32.mxu0 0.0
        %2166 = vmatmul.mubr.f32.gmra.mrb[0].mxu0 %v1866
        %v2167 = vpop.f32.mrb[0].mxu0
        %v2168 = vadd.f32 %v1796, %v2167
        %v2169 = vpop.f32.mrb[0].mxu0
        %2170 = vmatprep.mubr.f32.mxu0 0.0
        %2171 = vmatmul.mubr.f32.gmra.mrb[0].mxu0 %v1869
        %v2172 = vpop.f32.mrb[0].mxu0
        %v2173 = vadd.f32 %v1796, %v2172
        %v2174 = vpop.f32.mrb[0].mxu0
        %2175 = vmatprep.mubr.f32.mxu0 0.0
        %2176 = vmatmul.mubr.f32.gmra.mrb[0].mxu0 %v1872
        %v2177 = vpop.f32.mrb[0].mxu0
        %v2178 = vadd.f32 %v1796, %v2177
        %v2179 = vpop.f32.mrb[0].mxu0
        %2180 = vmatprep.mubr.f32.mxu0 0.0
        %2181 = vmatmul.mubr.f32.gmra.mrb[0].mxu0 %v1875
        %v2182 = vpop.f32.mrb[0].mxu0
        %v2183 = vadd.f32 %v1796, %v2182
        %v2184 = vpop.f32.mrb[0].mxu0
        %2185 = vmatprep.mubr.f32.mxu0 0.0
        %2186 = vmatmul.mubr.f32.gmra.mrb[0].mxu0 %v1878
        %v2187 = vpop.f32.mrb[0].mxu0
        %v2188 = vadd.f32 %v1796, %v2187
        %v2189 = vpop.f32.mrb[0].mxu0
        %2190 = vmatprep.mubr.f32.mxu0 0.0
        %2191 = vmatmul.mubr.f32.gmra.mrb[0].mxu0 %v1881
        %v2192 = vpop.f32.mrb[0].mxu0
        %v2193 = vadd.f32 %v1796, %v2192
        %v2194 = vpop.f32.mrb[0].mxu0
        %2195 = vmatprep.mubr.f32.mxu0 0.0
        %2196 = vmatmul.mubr.f32.gmra.mrb[0].mxu0 %v1884
        %v2197 = vpop.f32.mrb[0].mxu0
        %v2198 = vadd.f32 %v1796, %v2197
        %v2199 = vpop.f32.mrb[0].mxu0
        %2200 = vmatprep.mubr.f32.mxu0 0.0
        %2201 = vmatmul.mubr.f32.gmra.mrb[0].mxu0 %v1887
        %v2202 = vpop.f32.mrb[0].mxu0
        %v2203 = vadd.f32 %v1796, %v2202
        %v2204 = vpop.f32.mrb[0].mxu0
        %2205 = vmatprep.mubr.f32.mxu0 0.0
        %2206 = vmatmul.mubr.f32.gmra.mrb[0].mxu0 %v1890
        %v2207 = vpop.f32.mrb[0].mxu0
        %v2208 = vadd.f32 %v1796, %v2207
        %v2209 = vpop.f32.mrb[0].mxu0
        %2210 = vmatprep.mubr.f32.mxu0 0.0
        %2211 = vmatmul.mubr.f32.gmra.mrb[0].mxu0 %v1893
        %v2212 = vpop.f32.mrb[0].mxu0
        %v2213 = vadd.f32 %v1796, %v2212
        %v2214 = vpop.f32.mrb[0].mxu0
        %2215 = vmatprep.mubr.f32.mxu0 0.0
        %2216 = vmatmul.mubr.f32.gmra.mrb[0].mxu0 %v1896
        %v2217 = vpop.f32.mrb[0].mxu0
        %v2218 = vadd.f32 %v1796, %v2217
        %v2219 = vpop.f32.mrb[0].mxu0
        %2220 = vmatprep.mubr.f32.mxu0 0.0
        %2221 = vmatmul.mubr.f32.gmra.mrb[0].mxu0 %v1899
        %v2222 = vpop.f32.mrb[0].mxu0
        %v2223 = vadd.f32 %v1796, %v2222
        %v2224 = vpop.f32.mrb[0].mxu0
        %2225 = vmatprep.mubr.f32.mxu0 0.0
        %2226 = vmatmul.mubr.f32.gmra.mrb[0].mxu0 %v1902
        %v2227 = vpop.f32.mrb[0].mxu0
        %v2228 = vadd.f32 %v1796, %v2227
        %v2229 = vpop.f32.mrb[0].mxu0
        %2230 = vmatprep.mubr.f32.mxu0 0.0
        %2231 = vmatmul.mubr.f32.gmra.mrb[0].mxu0 %v1905
        %v2232 = vpop.f32.mrb[0].mxu0
        %v2233 = vadd.f32 %v1796, %v2232
        %v2234 = vpop.f32.mrb[0].mxu0
        %2235 = vmatprep.mubr.f32.mxu0 0.0
        %2236 = vmatmul.mubr.f32.gmra.mrb[0].mxu0 %v1908
        %v2237 = vpop.f32.mrb[0].mxu0
        %v2238 = vadd.f32 %v1796, %v2237
        %v2239 = vpop.f32.mrb[0].mxu0
        %2240 = vmatprep.mubr.f32.mxu0 0.0
        %2241 = vmatmul.mubr.f32.gmra.mrb[0].mxu0 %v1911
        %v2242 = vpop.f32.mrb[0].mxu0
        %v2243 = vadd.f32 %v1796, %v2242
        %v2244 = vpop.f32.mrb[0].mxu0
        %2245 = vmatprep.mubr.f32.mxu0 0.0
        %2246 = vmatmul.mubr.f32.gmra.mrb[0].mxu0 %v1914
        %v2247 = vpop.f32.mrb[0].mxu0
        %v2248 = vadd.f32 %v1796, %v2247
        %v2249 = vpop.f32.mrb[0].mxu0
        %2250 = vmatprep.mubr.f32.mxu0 0.0
        %2251 = vmatmul.mubr.f32.gmra.mrb[0].mxu0 %v1917
        %v2252 = vpop.f32.mrb[0].mxu0
        %v2253 = vadd.f32 %v1796, %v2252
        %v2254 = vpop.f32.mrb[0].mxu0
        %2255 = vmatprep.mubr.f32.mxu0 0.0
        %2256 = vmatmul.mubr.f32.gmra.mrb[0].mxu0 %v1920
        %v2257 = vpop.f32.mrb[0].mxu0
        %v2258 = vadd.f32 %v1796, %v2257
        %v2259 = vpop.f32.mrb[0].mxu0
        %2260 = vmatprep.mubr.f32.mxu0 0.0
        %2261 = vmatmul.mubr.f32.gmra.mrb[0].mxu0 %v1923
        %v2262 = vpop.f32.mrb[0].mxu0
        %v2263 = vadd.f32 %v1796, %v2262
        %v2264 = vpop.f32.mrb[0].mxu0
        %2265 = vmatprep.mubr.f32.mxu0 0.0
        %2266 = vmatmul.mubr.f32.gmra.mrb[0].mxu0 %v1926
        %v2267 = vpop.f32.mrb[0].mxu0
        %v2268 = vadd.f32 %v1796, %v2267
        %v2269 = vpop.f32.mrb[0].mxu0
        %2270 = vmatprep.mubr.f32.mxu0 0.0
        %2271 = vmatmul.mubr.f32.gmra.mrb[0].mxu0 %v1929
        %v2272 = vpop.f32.mrb[0].mxu0
        %v2273 = vadd.f32 %v1796, %v2272
        %v2274 = vpop.f32.mrb[0].mxu0
        %2275 = vmatprep.mubr.f32.mxu0 0.0
        %2276 = vmatmul.mubr.f32.gmra.mrb[0].mxu0 %v1932
        %v2277 = vpop.f32.mrb[0].mxu0
        %v2278 = vadd.f32 %v1796, %v2277
        %v2279 = vpop.f32.mrb[0].mxu0
        %2280 = vmatprep.mubr.f32.mxu0 0.0
        %2281 = vmatmul.mubr.f32.gmra.mrb[0].mxu0 %v1935
        %v2282 = vpop.f32.mrb[0].mxu0
        %v2283 = vadd.f32 %v1796, %v2282
        %v2284 = vpop.f32.mrb[0].mxu0
        %2285 = vmatprep.mubr.f32.mxu0 0.0
        %2286 = vmatmul.mubr.f32.gmra.mrb[0].mxu0 %v1938
        %v2287 = vpop.f32.mrb[0].mxu0
        %v2288 = vadd.f32 %v1796, %v2287
        %v2289 = vpop.f32.mrb[0].mxu0
        %2290 = vmatprep.mubr.f32.mxu0 0.0
        %2291 = vmatmul.mubr.f32.gmra.mrb[0].mxu0 %v1941
        %v2292 = vpop.f32.mrb[0].mxu0
        %v2293 = vadd.f32 %v1796, %v2292
        %v2294 = vpop.f32.mrb[0].mxu0
        %2295 = vmatprep.mubr.f32.mxu0 0.0
        %2296 = vmatmul.mubr.f32.gmra.mrb[0].mxu0 %v1944
        %v2297 = vpop.f32.mrb[0].mxu0
        %v2298 = vadd.f32 %v1796, %v2297
        %v2299 = vpop.f32.mrb[0].mxu0
        %2300 = vmatprep.mubr.f32.mxu0 0.0
        %2301 = vmatmul.mubr.f32.gmra.mrb[0].mxu0 %v1947
        %v2302 = vpop.f32.mrb[0].mxu0
        %v2303 = vadd.f32 %v1796, %v2302
        %v2304 = vpop.f32.mrb[0].mxu0
        %2305 = vmatprep.mubr.f32.mxu0 0.0
        %2306 = vmatmul.mubr.f32.gmra.mrb[0].mxu0 %v1950
        %v2307 = vpop.f32.mrb[0].mxu0
        %v2308 = vadd.f32 %v1796, %v2307
        %v2309 = vpop.f32.mrb[0].mxu0
        %2310 = vmatprep.mubr.f32.mxu0 0.0
        %2311 = vmatmul.mubr.f32.gmra.mrb[0].mxu0 %v1953
        %v2312 = vpop.f32.mrb[0].mxu0
        %v2313 = vadd.f32 %v1796, %v2312
        %v2314 = vpop.f32.mrb[0].mxu0
        %2315 = vmatprep.mubr.f32.mxu0 0.0
        %2316 = vmatmul.mubr.f32.gmra.mrb[0].mxu0 %v1956
        %v2317 = vpop.f32.mrb[0].mxu0
        %v2318 = vadd.f32 %v1796, %v2317
        %v2319 = vpop.f32.mrb[0].mxu0
        %2320 = vmatprep.mubr.f32.mxu0 0.0
        %2321 = vmatmul.mubr.f32.gmra.mrb[0].mxu0 %v1959
        %v2322 = vpop.f32.mrb[0].mxu0
        %v2323 = vadd.f32 %v1796, %v2322
        %v2324 = vpop.f32.mrb[0].mxu0
        %2325 = vmatprep.mubr.f32.mxu0 0.0
        %2326 = vmatmul.mubr.f32.gmra.mrb[0].mxu0 %v1962
        %v2327 = vpop.f32.mrb[0].mxu0
        %v2328 = vadd.f32 %v1796, %v2327
        %v2329 = vpop.f32.mrb[0].mxu0
        %2330 = vmatprep.mubr.f32.mxu0 0.0
        %2331 = vmatmul.mubr.f32.gmra.mrb[0].mxu0 %v1965
        %v2332 = vpop.f32.mrb[0].mxu0
        %v2333 = vadd.f32 %v1796, %v2332
        %v2334 = vpop.f32.mrb[0].mxu0
        %2335 = vmatprep.mubr.f32.mxu0 0.0
        %2336 = vmatmul.mubr.f32.gmra.mrb[0].mxu0 %v1968
        %v2337 = vpop.f32.mrb[0].mxu0
        %v2338 = vadd.f32 %v1796, %v2337
        %v2339 = vpop.f32.mrb[0].mxu0
        %2340 = vmatprep.mubr.f32.mxu0 0.0
        %2341 = vmatmul.mubr.f32.gmra.mrb[0].mxu0 %v1971
        %v2342 = vpop.f32.mrb[0].mxu0
        %v2343 = vadd.f32 %v1796, %v2342
        %v2344 = vpop.f32.mrb[0].mxu0
        %2345 = vmatprep.mubr.f32.mxu0 0.0
        %2346 = vmatmul.mubr.f32.gmra.mrb[0].mxu0 %v1974
        %v2347 = vpop.f32.mrb[0].mxu0
        %v2348 = vadd.f32 %v1796, %v2347
        %v2349 = vpop.f32.mrb[0].mxu0
        %2350 = vmatprep.mubr.f32.mxu0 0.0
        %2351 = vmatmul.mubr.f32.gmra.mrb[0].mxu0 %v1977
        %v2352 = vpop.f32.mrb[0].mxu0
        %v2353 = vadd.f32 %v1796, %v2352
        %v2354 = vpop.f32.mrb[0].mxu0
        %2355 = vmatprep.mubr.f32.mxu0 0.0
        %2356 = vmatmul.mubr.f32.gmra.mrb[0].mxu0 %v1980
        %v2357 = vpop.f32.mrb[0].mxu0
        %v2358 = vadd.f32 %v1796, %v2357
        %v2359 = vpop.f32.mrb[0].mxu0
        %2360 = vmatprep.mubr.f32.mxu0 0.0
        %2361 = vmatmul.mubr.f32.gmra.mrb[0].mxu0 %v1983
        %v2362 = vpop.f32.mrb[0].mxu0
        %v2363 = vadd.f32 %v1796, %v2362
        %v2364 = vpop.f32.mrb[0].mxu0
        %2365 = vmatprep.mubr.f32.mxu0 0.0
        %2366 = vmatmul.mubr.f32.gmra.mrb[0].mxu0 %v1986
        %v2367 = vpop.f32.mrb[0].mxu0
        %v2368 = vadd.f32 %v1796, %v2367
        %v2369 = vpop.f32.mrb[0].mxu0
        %2370 = vmatprep.mubr.f32.mxu0 0.0
        %2371 = vmatmul.mubr.f32.gmra.mrb[0].mxu0 %v1989
        %v2372 = vpop.f32.mrb[0].mxu0
        %v2373 = vadd.f32 %v1796, %v2372
        %v2374 = vpop.f32.mrb[0].mxu0
        %2375 = vdwg.mxu0
        %v2376 = vtanh.pop %v2058
        %v2377 = vtanh.pop %v2063
        %v2378 = vtanh.pop %v2068
        %v2379 = vtanh.pop %v2073
        %v2380 = vtanh.pop %v2078
        %v2381 = vtanh.pop %v2083
        %v2382 = vtanh.pop %v2088
        %v2383 = vtanh.pop %v2093
        %v2384 = vtanh.pop %v2098
        %v2385 = vtanh.pop %v2103
        %v2386 = vtanh.pop %v2108
        %v2387 = vtanh.pop %v2113
        %v2388 = vtanh.pop %v2118
        %v2389 = vtanh.pop %v2123
        %v2390 = vtanh.pop %v2128
        %v2391 = vtanh.pop %v2133
        %v2392 = vtanh.pop %v2138
        %v2393 = vtanh.pop %v2143
        %v2394 = vtanh.pop %v2148
        %v2395 = vtanh.pop %v2153
        %v2396 = vtanh.pop %v2158
        %v2397 = vtanh.pop %v2163
        %v2398 = vtanh.pop %v2168
        %v2399 = vtanh.pop %v2173
        %v2400 = vtanh.pop %v2178
        %v2401 = vtanh.pop %v2183
        %v2402 = vtanh.pop %v2188
        %v2403 = vtanh.pop %v2193
        %v2404 = vtanh.pop %v2198
        %v2405 = vtanh.pop %v2203
        %v2406 = vtanh.pop %v2208
        %v2407 = vtanh.pop %v2213
        %v2408 = vtanh.pop %v2218
        %v2409 = vtanh.pop %v2223
        %v2410 = vtanh.pop %v2228
        %v2411 = vtanh.pop %v2233
        %v2412 = vtanh.pop %v2238
        %v2413 = vtanh.pop %v2243
        %v2414 = vtanh.pop %v2248
        %v2415 = vtanh.pop %v2253
        %v2416 = vtanh.pop %v2258
        %v2417 = vtanh.pop %v2263
        %v2418 = vtanh.pop %v2268
        %v2419 = vtanh.pop %v2273
        %v2420 = vtanh.pop %v2278
        %v2421 = vtanh.pop %v2283
        %v2422 = vtanh.pop %v2288
        %v2423 = vtanh.pop %v2293
        %v2424 = vtanh.pop %v2298
        %v2425 = vtanh.pop %v2303
        %v2426 = vtanh.pop %v2308
        %v2427 = vtanh.pop %v2313
        %v2428 = vtanh.pop %v2318
        %v2429 = vtanh.pop %v2323
        %v2430 = vtanh.pop %v2328
        %v2431 = vtanh.pop %v2333
        %v2432 = vtanh.pop %v2338
        %v2433 = vtanh.pop %v2343
        %v2434 = vtanh.pop %v2348
        %v2435 = vtanh.pop %v2353
        %v2436 = vtanh.pop %v2358
        %v2437 = vtanh.pop %v2363
        %v2438 = vtanh.pop %v2368
        %v2439 = vtanh.pop %v2373
        %v2440 = vld [vmem:[%s7] sm:$0x1]
        %v2441 = vld [vmem:[#allocation2] sm:$0x1]
        %2443 = vset.pattern.permute.xlu0 0
        %2444 = vperm.xlu0 %2443, %v2441
        %v2445 = vpop.permute.xlu0 %2444
        %v2447 = vlaneseq
        %v2448 = vshrl.u32 %v2447, 7
        %v2449 = vsub.s32 0, %v2448
        %v2450 = vrot.slane %v2445, %v2449
        %v2452 = vsel %vm1798, %v2440, 0
        %v2455 = vsel %vm1798, %v2376, 0
        %v2458 = vsel %vm1798, %v2377, 0
        %v2461 = vsel %vm1798, %v2378, 0
        %v2464 = vsel %vm1798, %v2379, 0
        %v2467 = vsel %vm1798, %v2380, 0
        %v2470 = vsel %vm1798, %v2381, 0
        %v2473 = vsel %vm1798, %v2382, 0
        %v2476 = vsel %vm1798, %v2383, 0
        %v2479 = vsel %vm1798, %v2384, 0
        %v2482 = vsel %vm1798, %v2385, 0
        %v2485 = vsel %vm1798, %v2386, 0
        %v2488 = vsel %vm1798, %v2387, 0
        %v2491 = vsel %vm1798, %v2388, 0
        %v2494 = vsel %vm1798, %v2389, 0
        %v2497 = vsel %vm1798, %v2390, 0
        %v2500 = vsel %vm1798, %v2391, 0
        %v2503 = vsel %vm1798, %v2392, 0
        %v2506 = vsel %vm1798, %v2393, 0
        %v2509 = vsel %vm1798, %v2394, 0
        %v2512 = vsel %vm1798, %v2395, 0
        %v2515 = vsel %vm1798, %v2396, 0
        %v2518 = vsel %vm1798, %v2397, 0
        %v2521 = vsel %vm1798, %v2398, 0
        %v2524 = vsel %vm1798, %v2399, 0
        %v2527 = vsel %vm1798, %v2400, 0
        %v2530 = vsel %vm1798, %v2401, 0
        %v2533 = vsel %vm1798, %v2402, 0
        %v2536 = vsel %vm1798, %v2403, 0
        %v2539 = vsel %vm1798, %v2404, 0
        %v2542 = vsel %vm1798, %v2405, 0
        %v2545 = vsel %vm1798, %v2406, 0
        %v2548 = vsel %vm1798, %v2407, 0
        %v2551 = vsel %vm1798, %v2408, 0
        %v2554 = vsel %vm1798, %v2409, 0
        %v2557 = vsel %vm1798, %v2410, 0
        %v2560 = vsel %vm1798, %v2411, 0
        %v2563 = vsel %vm1798, %v2412, 0
        %v2566 = vsel %vm1798, %v2413, 0
        %v2569 = vsel %vm1798, %v2414, 0
        %v2572 = vsel %vm1798, %v2415, 0
        %v2575 = vsel %vm1798, %v2416, 0
        %v2578 = vsel %vm1798, %v2417, 0
        %v2581 = vsel %vm1798, %v2418, 0
        %v2584 = vsel %vm1798, %v2419, 0
        %v2587 = vsel %vm1798, %v2420, 0
        %v2590 = vsel %vm1798, %v2421, 0
        %v2593 = vsel %vm1798, %v2422, 0
        %v2596 = vsel %vm1798, %v2423, 0
        %v2599 = vsel %vm1798, %v2424, 0
        %v2602 = vsel %vm1798, %v2425, 0
        %v2605 = vsel %vm1798, %v2426, 0
        %v2608 = vsel %vm1798, %v2427, 0
        %v2611 = vsel %vm1798, %v2428, 0
        %v2614 = vsel %vm1798, %v2429, 0
        %v2617 = vsel %vm1798, %v2430, 0
        %v2620 = vsel %vm1798, %v2431, 0
        %v2623 = vsel %vm1798, %v2432, 0
        %v2626 = vsel %vm1798, %v2433, 0
        %v2629 = vsel %vm1798, %v2434, 0
        %v2632 = vsel %vm1798, %v2435, 0
        %v2635 = vsel %vm1798, %v2436, 0
        %v2638 = vsel %vm1798, %v2437, 0
        %v2641 = vsel %vm1798, %v2438, 0
        %v2644 = vsel %vm1798, %v2439, 0
        %2646 = vmatprep.subr.mxu0 0.0
        %2647 = vmatpush1.xpose.msra.mxu0 %v2455
        %2648 = vmatprep.subr.mxu0 0.0
        %2649 = vmatpush1.xpose.msra.mxu0 %v2458
        %2650 = vmatprep.subr.mxu0 0.0
        %2651 = vmatpush1.xpose.msra.mxu0 %v2461
        %2652 = vmatprep.subr.mxu0 0.0
        %2653 = vmatpush1.xpose.msra.mxu0 %v2464
        %2654 = vmatprep.subr.mxu0 0.0
        %2655 = vmatpush1.xpose.msra.mxu0 %v2467
        %2656 = vmatprep.subr.mxu0 0.0
        %2657 = vmatpush1.xpose.msra.mxu0 %v2470
        %2658 = vmatprep.subr.mxu0 0.0
        %2659 = vmatpush1.xpose.msra.mxu0 %v2473
        %2660 = vmatprep.subr.mxu0 0.0
        %2661 = vmatpush1.xpose.msra.mxu0 %v2476
        %2662 = vmatprep.subr.mxu0 0.0
        %2663 = vmatpush1.xpose.msra.mxu0 %v2479
        %2664 = vmatprep.subr.mxu0 0.0
        %2665 = vmatpush1.xpose.msra.mxu0 %v2482
        %2666 = vmatprep.subr.mxu0 0.0
        %2667 = vmatpush1.xpose.msra.mxu0 %v2485
        %2668 = vmatprep.subr.mxu0 0.0
        %2669 = vmatpush1.xpose.msra.mxu0 %v2488
        %2670 = vmatprep.subr.mxu0 0.0
        %2671 = vmatpush1.xpose.msra.mxu0 %v2491
        %2672 = vmatprep.subr.mxu0 0.0
        %2673 = vmatpush1.xpose.msra.mxu0 %v2494
        %2674 = vmatprep.subr.mxu0 0.0
        %2675 = vmatpush1.xpose.msra.mxu0 %v2497
        %2676 = vmatprep.subr.mxu0 0.0
        %2677 = vmatpush1.xpose.msra.mxu0 %v2500
        %2678 = vmatprep.subr.mxu0 0.0
        %2679 = vmatpush1.xpose.msra.mxu0 %v2503
        %2680 = vmatprep.subr.mxu0 0.0
        %2681 = vmatpush1.xpose.msra.mxu0 %v2506
        %2682 = vmatprep.subr.mxu0 0.0
        %2683 = vmatpush1.xpose.msra.mxu0 %v2509
        %2684 = vmatprep.subr.mxu0 0.0
        %2685 = vmatpush1.xpose.msra.mxu0 %v2512
        %2686 = vmatprep.subr.mxu0 0.0
        %2687 = vmatpush1.xpose.msra.mxu0 %v2515
        %2688 = vmatprep.subr.mxu0 0.0
        %2689 = vmatpush1.xpose.msra.mxu0 %v2518
        %2690 = vmatprep.subr.mxu0 0.0
        %2691 = vmatpush1.xpose.msra.mxu0 %v2521
        %2692 = vmatprep.subr.mxu0 0.0
        %2693 = vmatpush1.xpose.msra.mxu0 %v2524
        %2694 = vmatprep.subr.mxu0 0.0
        %2695 = vmatpush1.xpose.msra.mxu0 %v2527
        %2696 = vmatprep.subr.mxu0 0.0
        %2697 = vmatpush1.xpose.msra.mxu0 %v2530
        %2698 = vmatprep.subr.mxu0 0.0
        %2699 = vmatpush1.xpose.msra.mxu0 %v2533
        %2700 = vmatprep.subr.mxu0 0.0
        %2701 = vmatpush1.xpose.msra.mxu0 %v2536
        %2702 = vmatprep.subr.mxu0 0.0
        %2703 = vmatpush1.xpose.msra.mxu0 %v2539
        %2704 = vmatprep.subr.mxu0 0.0
        %2705 = vmatpush1.xpose.msra.mxu0 %v2542
        %2706 = vmatprep.subr.mxu0 0.0
        %2707 = vmatpush1.xpose.msra.mxu0 %v2545
        %2708 = vmatprep.subr.mxu0 0.0
        %2709 = vmatpush1.xpose.msra.mxu0 %v2548
        %2710 = vmatprep.mubr.f32.mxu0 0.0
        %2711 = vmatmul.mubr.f32.gmra.mrb[0].mxu0 %v2452
        %v2712 = vpop.f32.mrb[0].mxu0
        %v2713 = vadd.f32 %v2450, %v2712
        %v2714 = vpop.f32.mrb[0].mxu0
        %v2715 = vadd.f32 %v2450, %v2714
        %2716 = vdwg.mxu0
        %2717 = vmatprep.subr.mxu0 0.0
        %2718 = vmatpush1.xpose.msra.mxu0 %v2551
        %2719 = vmatprep.subr.mxu0 0.0
        %2720 = vmatpush1.xpose.msra.mxu0 %v2554
        %2721 = vmatprep.subr.mxu0 0.0
        %2722 = vmatpush1.xpose.msra.mxu0 %v2557
        %2723 = vmatprep.subr.mxu0 0.0
        %2724 = vmatpush1.xpose.msra.mxu0 %v2560
        %2725 = vmatprep.subr.mxu0 0.0
        %2726 = vmatpush1.xpose.msra.mxu0 %v2563
        %2727 = vmatprep.subr.mxu0 0.0
        %2728 = vmatpush1.xpose.msra.mxu0 %v2566
        %2729 = vmatprep.subr.mxu0 0.0
        %2730 = vmatpush1.xpose.msra.mxu0 %v2569
        %2731 = vmatprep.subr.mxu0 0.0
        %2732 = vmatpush1.xpose.msra.mxu0 %v2572
        %2733 = vmatprep.subr.mxu0 0.0
        %2734 = vmatpush1.xpose.msra.mxu0 %v2575
        %2735 = vmatprep.subr.mxu0 0.0
        %2736 = vmatpush1.xpose.msra.mxu0 %v2578
        %2737 = vmatprep.subr.mxu0 0.0
        %2738 = vmatpush1.xpose.msra.mxu0 %v2581
        %2739 = vmatprep.subr.mxu0 0.0
        %2740 = vmatpush1.xpose.msra.mxu0 %v2584
        %2741 = vmatprep.subr.mxu0 0.0
        %2742 = vmatpush1.xpose.msra.mxu0 %v2587
        %2743 = vmatprep.subr.mxu0 0.0
        %2744 = vmatpush1.xpose.msra.mxu0 %v2590
        %2745 = vmatprep.subr.mxu0 0.0
        %2746 = vmatpush1.xpose.msra.mxu0 %v2593
        %2747 = vmatprep.subr.mxu0 0.0
        %2748 = vmatpush1.xpose.msra.mxu0 %v2596
        %2749 = vmatprep.subr.mxu0 0.0
        %2750 = vmatpush1.xpose.msra.mxu0 %v2599
        %2751 = vmatprep.subr.mxu0 0.0
        %2752 = vmatpush1.xpose.msra.mxu0 %v2602
        %2753 = vmatprep.subr.mxu0 0.0
        %2754 = vmatpush1.xpose.msra.mxu0 %v2605
        %2755 = vmatprep.subr.mxu0 0.0
        %2756 = vmatpush1.xpose.msra.mxu0 %v2608
        %2757 = vmatprep.subr.mxu0 0.0
        %2758 = vmatpush1.xpose.msra.mxu0 %v2611
        %2759 = vmatprep.subr.mxu0 0.0
        %2760 = vmatpush1.xpose.msra.mxu0 %v2614
        %2761 = vmatprep.subr.mxu0 0.0
        %2762 = vmatpush1.xpose.msra.mxu0 %v2617
        %2763 = vmatprep.subr.mxu0 0.0
        %2764 = vmatpush1.xpose.msra.mxu0 %v2620
        %2765 = vmatprep.subr.mxu0 0.0
        %2766 = vmatpush1.xpose.msra.mxu0 %v2623
        %2767 = vmatprep.subr.mxu0 0.0
        %2768 = vmatpush1.xpose.msra.mxu0 %v2626
        %2769 = vmatprep.subr.mxu0 0.0
        %2770 = vmatpush1.xpose.msra.mxu0 %v2629
        %2771 = vmatprep.subr.mxu0 0.0
        %2772 = vmatpush1.xpose.msra.mxu0 %v2632
        %2773 = vmatprep.subr.mxu0 0.0
        %2774 = vmatpush1.xpose.msra.mxu0 %v2635
        %2775 = vmatprep.subr.mxu0 0.0
        %2776 = vmatpush1.xpose.msra.mxu0 %v2638
        %2777 = vmatprep.subr.mxu0 0.0
        %2778 = vmatpush1.xpose.msra.mxu0 %v2641
        %2779 = vmatprep.subr.mxu0 0.0
        %2780 = vmatpush1.xpose.msra.mxu0 %v2644
        %2781 = vmatprep.mubr.f32.mxu0 0.0
        %2782 = vmatmul.mubr.f32.gmra.mrb[0].mxu0 %v2452
        %v2783 = vpop.f32.mrb[0].mxu0
        %v2784 = vadd.f32 %v2450, %v2783
        %v2785 = vpop.f32.mrb[0].mxu0
        %v2786 = vadd.f32 %v2450, %v2785
        %2787 = vdwg.mxu0
        %v2792 = vcombine.low %v2713, %v2715
        %v2793 = vcombine.low %v2784, %v2786
        %v2795 = vunpack.c.l.s4 1966171168
        %v2796 = vunpack.c.0.s8 %v2795
        %v2797 = vlaneseq
        %v2798 = vshrl.u32 %v2797, 7
        %v2799 = vsub.s32 %v2796, %v2798
        %v2800 = vrot.slane %v2792, %v2799
        %v2802 = vunpack.c.l.s4 1966171168
        %v2803 = vunpack.c.0.s8 %v2802
        %v2804 = vlaneseq
        %v2805 = vshrl.u32 %v2804, 7
        %v2806 = vsub.s32 %v2803, %v2805
        %v2807 = vrot.slane %v2793, %v2806
        %v2808 = vcombine.low %v2800, %v2807
        %v2810 = vunpack.c.l.s4 1966171168
        %v2811 = vunpack.c.0.s8 %v2810
        %v2812 = vlaneseq
        %v2813 = vshrl.u32 %v2812, 7
        %v2814 = vsub.s32 %v2811, %v2813
        %v2815 = vrot.slane %v2808, %v2814
        %v2817 = vlaneseq
        %vm2818 = vcmp.ge.s32.totalorder %v2817, 0
        %vm2819 = vcmp.lt.s32.totalorder %v2817, 512
        %vm2820 = vmand %vm2818, %vm2819
        %2821 = vst.msk [vmem:[%s344] sm:$0xf] %vm2820, %v2815
        %s2822 = sand.u32 %s232, 1
        %s2823 = scalar_lea.sflag [#allocation4], %s2822
        %s2824 = sand.u32 %s232, 1
        %s2825 = smul.addr %s2824, 4
        %s2826 = scalar_lea.vmem [#allocation3], %s2825
        // Predicated region
        $region57: #{tpu_custom_call.1} parent=55 // pred_check
          %p2827 = pneg %p242
        $region58: #{tpu_custom_call.1} parent=55 // pred_check_branch
          %2829 = sbr.rel (%p2827) target = $region60
        $region59: #{tpu_custom_call.1} parent=55 // pred_region
          %s2830 = smul.u32 4, %s25
          %s2832 = ssub.s32 64, 64
          %2833 = vsyncadd %s2823, %s2832
          %s2834 = smul.addr %s2830, 16
          %s2835 = scalar_lea.hbm %s9, %s2834
          %s2837 = sshll.u32 %s2826, 4
          %s2838 = int_to_ptr.vmem [resolvable:$true] %s2837
          %2840 = dma.vmem_to_hbm [thread:$0]  %s2838, 64, %s2835, %s2823
        $region60: #{tpu_custom_call.1} parent=55 // pred_fallthru
          _
      $region56: #{tpu_custom_call.1} parent=5 // pred_fallthru
        _
      %p2841 = scmp.le.s32.totalorder 2, %s20
      // Predicated region
      $region61: #{tpu_custom_call.1} parent=5 // pred_check
        %p2842 = pneg %p2841
      $region62: #{tpu_custom_call.1} parent=5 // pred_check_branch
        %2844 = sbr.rel (%p2842) target = $region64
      $region63: #{tpu_custom_call.1} parent=5 // pred_region
        %s2845 = ssub.s32 %s20, 2
        // Predicated region
        $region65: #{tpu_custom_call.1} parent=63 // pred_check
          %p2846 = pneg %p248
        $region66: #{tpu_custom_call.1} parent=63 // pred_check_branch
          %2848 = sbr.rel (%p2846) target = $region68
        $region67: #{tpu_custom_call.1} parent=63 // pred_region
          %s2849 = sand.u32 %s233, 1
          %s2850 = scalar_lea.sflag [#allocation4], %s2849
          %s2851 = sand.u32 %s233, 1
          %s2852 = smul.addr %s2851, 4
          %s2853 = scalar_lea.vmem [#allocation3], %s2852
          %2854 = dma.done %s2850, 64
        $region68: #{tpu_custom_call.1} parent=63 // pred_fallthru
          _
      $region64: #{tpu_custom_call.1} parent=5 // pred_fallthru
        _
    $region6: #{tpu_custom_call.1} parent=1 // loop_footer
      %s24 = sadd.s32 1, %s20
    $region7: #{tpu_custom_call.1} parent=1 // loop_footer_branch
      %19 = sbr.rel target = $region3
    $region8: #{tpu_custom_call.1} parent=1 // loop_exit
      _
    %2855 = vsyncpa [#allocation4], 1
    %s2856 = scalar_lea.sflag [#allocation4], 1
    %2857 = vsyncpa %s2856, 1

</llo_original>
